<compile_context>
chip_gen: v7x
topology: tpu7x:2x2x1
jax: 0.10.0
libtpu: 0.0.40
codegen_flags: <defaults>
</compile_context>

<pallas_src>
import jax
import jax.numpy as jnp
from jax.experimental import pallas as pl
from jax.experimental.pallas import tpu as pltpu

N = 23            # number of graph nodes (fixed by the reference: n = 23)
G = 3             # lane-fused sub-actors: u, b, d
NG = G * N        # 69 lanes used of the 128-wide vreg
FPAD = 8          # padded feature width (max real feature width is 6)
N_LAYERS = 7      # 3 linear1 + 1 gnn + 3 linear2 layers per sub-actor
GNN_IDX = 3       # position of the GNN layer in the flattened layer list

# Architectures (linear1, linear2, gnn1) - static Python constants.
ARCH_UBD = ([6, 4, 4, 4], [4, 4, 2, 1], [4, 4])
ARCH_V2 = ([3, 4, 4, 4], [4, 4, 2, 1], [4, 4])


def _layer_dims(linear1, linear2, gnn1):
    dims = [(linear1[i], linear1[i + 1]) for i in range(len(linear1) - 1)]
    dims += [(gnn1[i], gnn1[i + 1]) for i in range(len(gnn1) - 1)]
    dims += [(linear2[i], linear2[i + 1]) for i in range(len(linear2) - 1)]
    return tuple(dims)


DIMS_UBD = _layer_dims(*ARCH_UBD)
DIMS_V2 = _layer_dims(*ARCH_V2)


def _tree_sum(terms):
    """Pairwise reduction: dependency depth O(log n) instead of O(n)."""
    while len(terms) > 1:
        nxt = [terms[i] + terms[i + 1] for i in range(0, len(terms) - 1, 2)]
        if len(terms) % 2:
            nxt.append(terms[-1])
        terms = nxt
    return terms[0]


# -----------------------------------------------------------------------------
# Fused Actor kernel
# -----------------------------------------------------------------------------
def actor_kernel(x_ref, w3_ref, b3_ref, p3_ref, a3_ref, post_ref,
                 wv_ref, bv_ref, pv_ref, a1_ref, out_ref, r_scr):
    """Refs:
       x_ref : [6, 69]          x^T tiled 3x along lanes (u|b|d groups)
       w3_ref: [7, 8, 8, 69]    pre-broadcast weights  [l,k,o,lane] = W[k,o]
       b3_ref: [7, 8, 69]       pre-broadcast biases
       p3_ref: [7, 8, 69]       pre-broadcast per-layer (N,1) scales
       a3_ref: [69, 69]         blockdiag(A, A, A),  A = p+p^T+I (symmetric)
       post_ref:[3, 69]         rows: threshold | offset | shape multiplier
       wv_ref: [7, 8, 8, 23]    v2 sub-actor slabs (same packing, 23 lanes)
       bv_ref: [7, 8, 23]
       pv_ref: [7, 8, 23]
       a1_ref: [23, 23]         A
       out_ref:[4, 23]          rows: v^T, b^T, d^T, u^T
       r_scr : [1, 69] VMEM     scratch for the u|b|d -> v2-input lane regroup
    """

    def leaky(v):
        return jnp.where(v > 0, v, 0.01 * v)

    def run_path(in_rows, w_ref, b_ref, p_ref, a_ref, dims):
        xx = None
        for l, (fi, fo) in enumerate(dims):
            rows = in_rows if l == 0 else [xx[k:k + 1, :] for k in range(fi)]
            # w_ref[l, k] is already a full [8, lanes] plane (pre-broadcast);
            # the only remaining broadcast is the activation row (sublanes).
            y = _tree_sum([w_ref[l, k] * rows[k] for k in range(fi)])
            if l == GNN_IDX:
                # TODO(synk): GNNlayer definition is not given in the reference
                # source; implemented as A @ (x @ W) + bias.  In transposed
                # layout the aggregation is z^T @ A (A symmetric) -> MXU dot.
                y = jnp.dot(y, a_ref[...], preferred_element_type=jnp.float32)
            y = y + b_ref[l]
            if l != N_LAYERS - 1:            # no LeakyReLU on the last layer
                y = leaky(y)
            xx = y * p_ref[l]
        return xx

    # --- fused u | b | d sub-actors (lanes 0:23 | 23:46 | 46:69) --------------
    in_rows = [x_ref[k:k + 1, :] for k in range(DIMS_UBD[0][0])]
    ubd = run_path(in_rows, w3_ref, b3_ref, p3_ref, a3_ref, DIMS_UBD)  # [8,69]

    # --- post-processing, branchless on a single row with per-lane constants --
    r = jnp.abs(ubd[0:1, :])
    thr = post_ref[0:1, :]
    off = post_ref[1:2, :]
    shp = post_ref[2:3, :]
    r = jnp.where(r < thr, r, 0.01 * r + off)
    r = r * shp                                     # [1, 69] = u | b | d

    # --- regroup lanes via a tiny VMEM round-trip (u/b/d become rows 0/1/2) ---
    r_scr[...] = r
    out_ref[1:2, :] = r_scr[:, pl.ds(N, N)]         # b
    out_ref[2:3, :] = r_scr[:, pl.ds(2 * N, N)]     # d
    out_ref[3:4, :] = r_scr[:, pl.ds(0, N)]         # u

    # --- v2 sub-actor on cat([u, b, d], -1)  (rows 0..2 in transposed layout) -
    v_rows = [r_scr[:, pl.ds(k * N, N)] for k in range(DIMS_V2[0][0])]
    v = run_path(v_rows, wv_ref, bv_ref, pv_ref, a1_ref, DIMS_V2)      # [8,23]
    out_ref[0:1, :] = jnp.tanh(v[0:1, :] * 0.01) * 0.4 + 1.0


# -----------------------------------------------------------------------------
# Parameter init (logical per-unit slabs, same layout as the validated version)
# -----------------------------------------------------------------------------
def _init_unit(key, linear1, linear2, gnn1):
    dims = _layer_dims(linear1, linear2, gnn1)
    assert len(dims) == N_LAYERS
    w_slab = jnp.zeros((N_LAYERS, FPAD, FPAD), jnp.float32)
    b_slab = jnp.zeros((N_LAYERS, FPAD, 1), jnp.float32)
    for l, (fi, fo) in enumerate(dims):
        key, kw, kb = jax.random.split(key, 3)
        w = jax.random.uniform(kw, (fi, fo), jnp.float32, -0.5, 0.5)
        bias = jax.random.uniform(kb, (fo,), jnp.float32, -0.5, 0.5)
        w_slab = w_slab.at[l, :fo, :fi].set(w.T)    # store W^T, zero padding
        b_slab = b_slab.at[l, :fo, 0].set(bias)
    key, kp = jax.random.split(key)
    # torch: Parameter(torch.rand((len_para, n, 1))) -> stored as [L, N]
    p_slab = jax.random.uniform(kp, (N_LAYERS, N), jnp.float32, 0.0, 1.0)
    return w_slab, b_slab, p_slab


def _pack_params(params):
    """Pre-broadcast all kernel operands along sublane/lane axes (init-time)."""
    w, b, p = params["w"], params["b"], params["p"]
    b_sh, d_sh, l_sh = (params["shapes"][0], params["shapes"][1],
                        params["shapes"][2])
    A = params["a_shape"]

    # fused u/b/d slabs: element [l, k, o, g*N + n] = W_g[l][k, o]
    w3 = jnp.repeat(jnp.transpose(w[:G], (1, 3, 2, 0)), N, axis=3)        # [7,8,8,69]
    b3 = jnp.repeat(jnp.transpose(b[:G, :, :, 0], (1, 2, 0)), N, axis=2)  # [7,8,69]
    p3 = jnp.broadcast_to(
        jnp.transpose(p[:G], (1, 0, 2)).reshape(N_LAYERS, NG)[:, None, :],
        (N_LAYERS, FPAD, NG))                                             # [7,8,69]
    a3 = jnp.kron(jnp.eye(G, dtype=jnp.float32), A)                       # [69,69]

    # per-lane post-processing constants: u | b | d groups
    full = lambda v: jnp.full((N,), v, jnp.float32)
    thr = jnp.concatenate([full(800.0), full(450.0), full(200.0)])
    off = jnp.concatenate([full(792.0), full(445.5), full(198.0)])
    shp = jnp.concatenate([l_sh, b_sh, d_sh * l_sh])
    post = jnp.stack([thr, off, shp])                                     # [3,69]

    # v2 slabs (single unit, 23 lanes)
    wv = jnp.broadcast_to(jnp.transpose(w[3], (0, 2, 1))[..., None],
                          (N_LAYERS, FPAD, FPAD, N))                      # [7,8,8,23]
    bv = jnp.broadcast_to(b[3, :, :, 0][..., None], (N_LAYERS, FPAD, N))  # [7,8,23]
    pv = jnp.broadcast_to(p[3][:, None, :], (N_LAYERS, FPAD, N))          # [7,8,23]

    return dict(w3=w3, b3=b3, p3=p3, a3=a3, post=post,
                wv=wv, bv=bv, pv=pv, a1=A)


def init_actor(key):
    keys = jax.random.split(key, 7)
    p_shape = jax.random.uniform(keys[0], (N, N), jnp.float32)
    b_shape = jax.random.uniform(keys[1], (N, 1), jnp.float32)
    d_shape = jax.random.uniform(keys[2], (N, 1), jnp.float32)
    last_shape = jnp.ones((N, 1), jnp.float32).at[-1, 0].set(0.0)
    a_shape = p_shape + p_shape.T + jnp.eye(N, dtype=jnp.float32)

    # Only units whose outputs reach the returned tensors (u, b, d, v2).
    # TODO(synk): p1 / p2 / v1 sub-actors are dead code in the reference
    # forward and are omitted.
    wu, bu, pu = _init_unit(keys[3], *ARCH_UBD)
    wb, bb, pb = _init_unit(keys[4], *ARCH_UBD)
    wd, bd, pd = _init_unit(keys[5], *ARCH_UBD)
    wv, bv, pv = _init_unit(keys[6], *ARCH_V2)

    params = dict(
        p_shape=p_shape,
        a_shape=a_shape,
        w=jnp.stack([wu, wb, wd, wv]),                               # [4,7,8,8]
        b=jnp.stack([bu, bb, bd, bv]),                               # [4,7,8,1]
        p=jnp.stack([pu, pb, pd, pv]),                               # [4,7,N]
        shapes=jnp.concatenate([b_shape.T, d_shape.T, last_shape.T], axis=0),
    )
    params["packed"] = _pack_params(params)
    return params


# -----------------------------------------------------------------------------
# Forward wrapper (single pallas_call)
# -----------------------------------------------------------------------------
_VMEM = pl.BlockSpec(memory_space=pltpu.MemorySpace.VMEM)


def actor_forward(params, x):
    """x: [N, 6] node features.  Returns (v, p_shape, b, d, u) like the module."""
    pk = params["packed"]
    x3 = jnp.tile(x.T.astype(jnp.float32), (1, G))      # [6, 69]: u|b|d copies
    out = pl.pallas_call(
        actor_kernel,
        out_shape=jax.ShapeDtypeStruct((4, N), jnp.float32),
        in_specs=[_VMEM] * 10,
        out_specs=_VMEM,
        scratch_shapes=[pltpu.VMEM((1, NG), jnp.float32)],
    )(x3, pk["w3"], pk["b3"], pk["p3"], pk["a3"], pk["post"],
      pk["wv"], pk["bv"], pk["pv"], pk["a1"])
    res = out.T                                          # [N, 4]
    v, b, d, u = res[:, 0:1], res[:, 1:2], res[:, 2:3], res[:, 3:4]
    return v, params["p_shape"], b, d, u


# -----------------------------------------------------------------------------
# Pure-JAX reference of the same math (for numerical validation)
# -----------------------------------------------------------------------------
def reference_forward(params, x):
    A = params["a_shape"]

    def sub(uidx, h, dims):
        for l, (fi, fo) in enumerate(dims):
            w = params["w"][uidx, l, :fo, :fi].T     # [fi, fo]
            bias = params["b"][uidx, l, :fo, 0]
            h = h @ w
            if l == GNN_IDX:
                h = A @ h
            h = h + bias
            if l != len(dims) - 1:
                h = jnp.where(h > 0, h, 0.01 * h)
            h = h * params["p"][uidx, l][:, None]
        return h

    u = sub(0, x, DIMS_UBD)
    b = sub(1, x, DIMS_UBD)
    d = sub(2, x, DIMS_UBD)
    b, d, u = jnp.abs(b), jnp.abs(d), jnp.abs(u)
    b = jnp.where(b < 450.0, b, 0.01 * b + 445.5)
    d = jnp.where(d < 200.0, d, 0.01 * d + 198.0)
    u = jnp.where(u < 800.0, u, 0.01 * u + 792.0)
    b_sh = params["shapes"][0][:, None]
    d_sh = params["shapes"][1][:, None]
    l_sh = params["shapes"][2][:, None]
    b = b * b_sh
    d = d * d_sh * l_sh
    u = u * l_sh
    v = sub(3, jnp.concatenate([u, b, d], axis=-1), DIMS_V2)
    v = jnp.tanh(v / 100.0) * 0.4 + 1.0
    return v, params["p_shape"], b, d, u


if __name__ == "__main__":
    key = jax.random.PRNGKey(0)
    kp, kx = jax.random.split(key)
    params = init_actor(kp)
    x = jax.random.uniform(kx, (N, 6), jnp.float32)   # [23 nodes, 6 features]

    fwd = jax.jit(actor_forward)
    v, p_shape, b, d, u = fwd(params, x)
    jax.block_until_ready((v, p_shape, b, d, u))

    assert v.shape == (N, 1) and p_shape.shape == (N, N)
    assert b.shape == (N, 1) and d.shape == (N, 1) and u.shape == (N, 1)

    rv, _, rb, rd, ru = reference_forward(params, x)
    for got, want in ((v, rv), (b, rb), (d, rd), (u, ru)):
        assert jnp.allclose(got, want, rtol=2e-3, atol=2e-3), (
            float(jnp.max(jnp.abs(got - want))))

    print("KERNEL_OK")
</pallas_src>

<mosaic_0001>
module attributes {stable_mosaic.version = 11 : i64} {
  func.func @actor_kernel(%arg0: memref<6x69xf32, #tpu.memory_space<vmem>>, %arg1: memref<7x8x8x69xf32, #tpu.memory_space<vmem>>, %arg2: memref<7x8x69xf32, #tpu.memory_space<vmem>>, %arg3: memref<7x8x69xf32, #tpu.memory_space<vmem>>, %arg4: memref<69x69xf32, #tpu.memory_space<vmem>>, %arg5: memref<3x69xf32, #tpu.memory_space<vmem>>, %arg6: memref<7x8x8x23xf32, #tpu.memory_space<vmem>>, %arg7: memref<7x8x23xf32, #tpu.memory_space<vmem>>, %arg8: memref<7x8x23xf32, #tpu.memory_space<vmem>>, %arg9: memref<23x23xf32, #tpu.memory_space<vmem>>, %arg10: memref<4x23xf32, #tpu.memory_space<vmem>>, %arg11: memref<1x69xf32, #tpu.memory_space<vmem>>) attributes {dimension_semantics = [], scalar_prefetch = 0 : i64, scratch_operands = 1 : i64, tpu.core_type = #tpu.core_type<tc>} {
    %c0 = arith.constant 0 : index
    %c0_0 = arith.constant 0 : index
    %0 = vector.load %arg0[%c0, %c0_0] : memref<6x69xf32, #tpu.memory_space<vmem>>, vector<1x69xf32>
    %c1 = arith.constant 1 : index
    %c0_1 = arith.constant 0 : index
    %1 = vector.load %arg0[%c1, %c0_1] : memref<6x69xf32, #tpu.memory_space<vmem>>, vector<1x69xf32>
    %c2 = arith.constant 2 : index
    %c0_2 = arith.constant 0 : index
    %2 = vector.load %arg0[%c2, %c0_2] : memref<6x69xf32, #tpu.memory_space<vmem>>, vector<1x69xf32>
    %c3 = arith.constant 3 : index
    %c0_3 = arith.constant 0 : index
    %3 = vector.load %arg0[%c3, %c0_3] : memref<6x69xf32, #tpu.memory_space<vmem>>, vector<1x69xf32>
    %c4 = arith.constant 4 : index
    %c0_4 = arith.constant 0 : index
    %4 = vector.load %arg0[%c4, %c0_4] : memref<6x69xf32, #tpu.memory_space<vmem>>, vector<1x69xf32>
    %c5 = arith.constant 5 : index
    %c0_5 = arith.constant 0 : index
    %5 = vector.load %arg0[%c5, %c0_5] : memref<6x69xf32, #tpu.memory_space<vmem>>, vector<1x69xf32>
    %c0_6 = arith.constant 0 : index
    %c0_7 = arith.constant 0 : index
    %c0_8 = arith.constant 0 : index
    %c0_9 = arith.constant 0 : index
    %6 = vector.load %arg1[%c0_6, %c0_7, %c0_8, %c0_9] : memref<7x8x8x69xf32, #tpu.memory_space<vmem>>, vector<1x1x8x69xf32>
    %7 = vector.shape_cast %6 : vector<1x1x8x69xf32> to vector<8x69xf32>
    %8 = vector.broadcast %0 : vector<1x69xf32> to vector<8x69xf32>
    %9 = arith.mulf %7, %8 : vector<8x69xf32>
    %c0_10 = arith.constant 0 : index
    %c1_11 = arith.constant 1 : index
    %c0_12 = arith.constant 0 : index
    %c0_13 = arith.constant 0 : index
    %10 = vector.load %arg1[%c0_10, %c1_11, %c0_12, %c0_13] : memref<7x8x8x69xf32, #tpu.memory_space<vmem>>, vector<1x1x8x69xf32>
    %11 = vector.shape_cast %10 : vector<1x1x8x69xf32> to vector<8x69xf32>
    %12 = vector.broadcast %1 : vector<1x69xf32> to vector<8x69xf32>
    %13 = arith.mulf %11, %12 : vector<8x69xf32>
    %c0_14 = arith.constant 0 : index
    %c2_15 = arith.constant 2 : index
    %c0_16 = arith.constant 0 : index
    %c0_17 = arith.constant 0 : index
    %14 = vector.load %arg1[%c0_14, %c2_15, %c0_16, %c0_17] : memref<7x8x8x69xf32, #tpu.memory_space<vmem>>, vector<1x1x8x69xf32>
    %15 = vector.shape_cast %14 : vector<1x1x8x69xf32> to vector<8x69xf32>
    %16 = vector.broadcast %2 : vector<1x69xf32> to vector<8x69xf32>
    %17 = arith.mulf %15, %16 : vector<8x69xf32>
    %c0_18 = arith.constant 0 : index
    %c3_19 = arith.constant 3 : index
    %c0_20 = arith.constant 0 : index
    %c0_21 = arith.constant 0 : index
    %18 = vector.load %arg1[%c0_18, %c3_19, %c0_20, %c0_21] : memref<7x8x8x69xf32, #tpu.memory_space<vmem>>, vector<1x1x8x69xf32>
    %19 = vector.shape_cast %18 : vector<1x1x8x69xf32> to vector<8x69xf32>
    %20 = vector.broadcast %3 : vector<1x69xf32> to vector<8x69xf32>
    %21 = arith.mulf %19, %20 : vector<8x69xf32>
    %c0_22 = arith.constant 0 : index
    %c4_23 = arith.constant 4 : index
    %c0_24 = arith.constant 0 : index
    %c0_25 = arith.constant 0 : index
    %22 = vector.load %arg1[%c0_22, %c4_23, %c0_24, %c0_25] : memref<7x8x8x69xf32, #tpu.memory_space<vmem>>, vector<1x1x8x69xf32>
    %23 = vector.shape_cast %22 : vector<1x1x8x69xf32> to vector<8x69xf32>
    %24 = vector.broadcast %4 : vector<1x69xf32> to vector<8x69xf32>
    %25 = arith.mulf %23, %24 : vector<8x69xf32>
    %c0_26 = arith.constant 0 : index
    %c5_27 = arith.constant 5 : index
    %c0_28 = arith.constant 0 : index
    %c0_29 = arith.constant 0 : index
    %26 = vector.load %arg1[%c0_26, %c5_27, %c0_28, %c0_29] : memref<7x8x8x69xf32, #tpu.memory_space<vmem>>, vector<1x1x8x69xf32>
    %27 = vector.shape_cast %26 : vector<1x1x8x69xf32> to vector<8x69xf32>
    %28 = vector.broadcast %5 : vector<1x69xf32> to vector<8x69xf32>
    %29 = arith.mulf %27, %28 : vector<8x69xf32>
    %30 = arith.addf %9, %13 : vector<8x69xf32>
    %31 = arith.addf %17, %21 : vector<8x69xf32>
    %32 = arith.addf %25, %29 : vector<8x69xf32>
    %33 = arith.addf %30, %31 : vector<8x69xf32>
    %34 = arith.addf %33, %32 : vector<8x69xf32>
    %c0_30 = arith.constant 0 : index
    %c0_31 = arith.constant 0 : index
    %c0_32 = arith.constant 0 : index
    %35 = vector.load %arg2[%c0_30, %c0_31, %c0_32] : memref<7x8x69xf32, #tpu.memory_space<vmem>>, vector<1x8x69xf32>
    %36 = vector.shape_cast %35 : vector<1x8x69xf32> to vector<8x69xf32>
    %37 = arith.addf %34, %36 : vector<8x69xf32>
    %cst = arith.constant 0.000000e+00 : f32
    %38 = vector.broadcast %cst : f32 to vector<8x69xf32>
    %39 = arith.cmpf ogt, %37, %38 : vector<8x69xf32>
    %cst_33 = arith.constant 0.00999999977 : f32
    %40 = vector.broadcast %cst_33 : f32 to vector<8x69xf32>
    %41 = arith.mulf %40, %37 : vector<8x69xf32>
    %42 = arith.select %39, %37, %41 : vector<8x69xi1>, vector<8x69xf32>
    %c0_34 = arith.constant 0 : index
    %c0_35 = arith.constant 0 : index
    %c0_36 = arith.constant 0 : index
    %43 = vector.load %arg3[%c0_34, %c0_35, %c0_36] : memref<7x8x69xf32, #tpu.memory_space<vmem>>, vector<1x8x69xf32>
    %44 = vector.shape_cast %43 : vector<1x8x69xf32> to vector<8x69xf32>
    %45 = arith.mulf %42, %44 : vector<8x69xf32>
    %46 = vector.extract_strided_slice %45 {offsets = [0, 0], sizes = [1, 69], strides = [1, 1]} : vector<8x69xf32> to vector<1x69xf32>
    %47 = vector.extract_strided_slice %45 {offsets = [1, 0], sizes = [1, 69], strides = [1, 1]} : vector<8x69xf32> to vector<1x69xf32>
    %48 = vector.extract_strided_slice %45 {offsets = [2, 0], sizes = [1, 69], strides = [1, 1]} : vector<8x69xf32> to vector<1x69xf32>
    %49 = vector.extract_strided_slice %45 {offsets = [3, 0], sizes = [1, 69], strides = [1, 1]} : vector<8x69xf32> to vector<1x69xf32>
    %c1_37 = arith.constant 1 : index
    %c0_38 = arith.constant 0 : index
    %c0_39 = arith.constant 0 : index
    %c0_40 = arith.constant 0 : index
    %50 = vector.load %arg1[%c1_37, %c0_38, %c0_39, %c0_40] : memref<7x8x8x69xf32, #tpu.memory_space<vmem>>, vector<1x1x8x69xf32>
    %51 = vector.shape_cast %50 : vector<1x1x8x69xf32> to vector<8x69xf32>
    %52 = vector.broadcast %46 : vector<1x69xf32> to vector<8x69xf32>
    %53 = arith.mulf %51, %52 : vector<8x69xf32>
    %c1_41 = arith.constant 1 : index
    %c1_42 = arith.constant 1 : index
    %c0_43 = arith.constant 0 : index
    %c0_44 = arith.constant 0 : index
    %54 = vector.load %arg1[%c1_41, %c1_42, %c0_43, %c0_44] : memref<7x8x8x69xf32, #tpu.memory_space<vmem>>, vector<1x1x8x69xf32>
    %55 = vector.shape_cast %54 : vector<1x1x8x69xf32> to vector<8x69xf32>
    %56 = vector.broadcast %47 : vector<1x69xf32> to vector<8x69xf32>
    %57 = arith.mulf %55, %56 : vector<8x69xf32>
    %c1_45 = arith.constant 1 : index
    %c2_46 = arith.constant 2 : index
    %c0_47 = arith.constant 0 : index
    %c0_48 = arith.constant 0 : index
    %58 = vector.load %arg1[%c1_45, %c2_46, %c0_47, %c0_48] : memref<7x8x8x69xf32, #tpu.memory_space<vmem>>, vector<1x1x8x69xf32>
    %59 = vector.shape_cast %58 : vector<1x1x8x69xf32> to vector<8x69xf32>
    %60 = vector.broadcast %48 : vector<1x69xf32> to vector<8x69xf32>
    %61 = arith.mulf %59, %60 : vector<8x69xf32>
    %c1_49 = arith.constant 1 : index
    %c3_50 = arith.constant 3 : index
    %c0_51 = arith.constant 0 : index
    %c0_52 = arith.constant 0 : index
    %62 = vector.load %arg1[%c1_49, %c3_50, %c0_51, %c0_52] : memref<7x8x8x69xf32, #tpu.memory_space<vmem>>, vector<1x1x8x69xf32>
    %63 = vector.shape_cast %62 : vector<1x1x8x69xf32> to vector<8x69xf32>
    %64 = vector.broadcast %49 : vector<1x69xf32> to vector<8x69xf32>
    %65 = arith.mulf %63, %64 : vector<8x69xf32>
    %66 = arith.addf %53, %57 : vector<8x69xf32>
    %67 = arith.addf %61, %65 : vector<8x69xf32>
    %68 = arith.addf %66, %67 : vector<8x69xf32>
    %c1_53 = arith.constant 1 : index
    %c0_54 = arith.constant 0 : index
    %c0_55 = arith.constant 0 : index
    %69 = vector.load %arg2[%c1_53, %c0_54, %c0_55] : memref<7x8x69xf32, #tpu.memory_space<vmem>>, vector<1x8x69xf32>
    %70 = vector.shape_cast %69 : vector<1x8x69xf32> to vector<8x69xf32>
    %71 = arith.addf %68, %70 : vector<8x69xf32>
    %cst_56 = arith.constant 0.000000e+00 : f32
    %72 = vector.broadcast %cst_56 : f32 to vector<8x69xf32>
    %73 = arith.cmpf ogt, %71, %72 : vector<8x69xf32>
    %cst_57 = arith.constant 0.00999999977 : f32
    %74 = vector.broadcast %cst_57 : f32 to vector<8x69xf32>
    %75 = arith.mulf %74, %71 : vector<8x69xf32>
    %76 = arith.select %73, %71, %75 : vector<8x69xi1>, vector<8x69xf32>
    %c1_58 = arith.constant 1 : index
    %c0_59 = arith.constant 0 : index
    %c0_60 = arith.constant 0 : index
    %77 = vector.load %arg3[%c1_58, %c0_59, %c0_60] : memref<7x8x69xf32, #tpu.memory_space<vmem>>, vector<1x8x69xf32>
    %78 = vector.shape_cast %77 : vector<1x8x69xf32> to vector<8x69xf32>
    %79 = arith.mulf %76, %78 : vector<8x69xf32>
    %80 = vector.extract_strided_slice %79 {offsets = [0, 0], sizes = [1, 69], strides = [1, 1]} : vector<8x69xf32> to vector<1x69xf32>
    %81 = vector.extract_strided_slice %79 {offsets = [1, 0], sizes = [1, 69], strides = [1, 1]} : vector<8x69xf32> to vector<1x69xf32>
    %82 = vector.extract_strided_slice %79 {offsets = [2, 0], sizes = [1, 69], strides = [1, 1]} : vector<8x69xf32> to vector<1x69xf32>
    %83 = vector.extract_strided_slice %79 {offsets = [3, 0], sizes = [1, 69], strides = [1, 1]} : vector<8x69xf32> to vector<1x69xf32>
    %c2_61 = arith.constant 2 : index
    %c0_62 = arith.constant 0 : index
    %c0_63 = arith.constant 0 : index
    %c0_64 = arith.constant 0 : index
    %84 = vector.load %arg1[%c2_61, %c0_62, %c0_63, %c0_64] : memref<7x8x8x69xf32, #tpu.memory_space<vmem>>, vector<1x1x8x69xf32>
    %85 = vector.shape_cast %84 : vector<1x1x8x69xf32> to vector<8x69xf32>
    %86 = vector.broadcast %80 : vector<1x69xf32> to vector<8x69xf32>
    %87 = arith.mulf %85, %86 : vector<8x69xf32>
    %c2_65 = arith.constant 2 : index
    %c1_66 = arith.constant 1 : index
    %c0_67 = arith.constant 0 : index
    %c0_68 = arith.constant 0 : index
    %88 = vector.load %arg1[%c2_65, %c1_66, %c0_67, %c0_68] : memref<7x8x8x69xf32, #tpu.memory_space<vmem>>, vector<1x1x8x69xf32>
    %89 = vector.shape_cast %88 : vector<1x1x8x69xf32> to vector<8x69xf32>
    %90 = vector.broadcast %81 : vector<1x69xf32> to vector<8x69xf32>
    %91 = arith.mulf %89, %90 : vector<8x69xf32>
    %c2_69 = arith.constant 2 : index
    %c2_70 = arith.constant 2 : index
    %c0_71 = arith.constant 0 : index
    %c0_72 = arith.constant 0 : index
    %92 = vector.load %arg1[%c2_69, %c2_70, %c0_71, %c0_72] : memref<7x8x8x69xf32, #tpu.memory_space<vmem>>, vector<1x1x8x69xf32>
    %93 = vector.shape_cast %92 : vector<1x1x8x69xf32> to vector<8x69xf32>
    %94 = vector.broadcast %82 : vector<1x69xf32> to vector<8x69xf32>
    %95 = arith.mulf %93, %94 : vector<8x69xf32>
    %c2_73 = arith.constant 2 : index
    %c3_74 = arith.constant 3 : index
    %c0_75 = arith.constant 0 : index
    %c0_76 = arith.constant 0 : index
    %96 = vector.load %arg1[%c2_73, %c3_74, %c0_75, %c0_76] : memref<7x8x8x69xf32, #tpu.memory_space<vmem>>, vector<1x1x8x69xf32>
    %97 = vector.shape_cast %96 : vector<1x1x8x69xf32> to vector<8x69xf32>
    %98 = vector.broadcast %83 : vector<1x69xf32> to vector<8x69xf32>
    %99 = arith.mulf %97, %98 : vector<8x69xf32>
    %100 = arith.addf %87, %91 : vector<8x69xf32>
    %101 = arith.addf %95, %99 : vector<8x69xf32>
    %102 = arith.addf %100, %101 : vector<8x69xf32>
    %c2_77 = arith.constant 2 : index
    %c0_78 = arith.constant 0 : index
    %c0_79 = arith.constant 0 : index
    %103 = vector.load %arg2[%c2_77, %c0_78, %c0_79] : memref<7x8x69xf32, #tpu.memory_space<vmem>>, vector<1x8x69xf32>
    %104 = vector.shape_cast %103 : vector<1x8x69xf32> to vector<8x69xf32>
    %105 = arith.addf %102, %104 : vector<8x69xf32>
    %cst_80 = arith.constant 0.000000e+00 : f32
    %106 = vector.broadcast %cst_80 : f32 to vector<8x69xf32>
    %107 = arith.cmpf ogt, %105, %106 : vector<8x69xf32>
    %cst_81 = arith.constant 0.00999999977 : f32
    %108 = vector.broadcast %cst_81 : f32 to vector<8x69xf32>
    %109 = arith.mulf %108, %105 : vector<8x69xf32>
    %110 = arith.select %107, %105, %109 : vector<8x69xi1>, vector<8x69xf32>
    %c2_82 = arith.constant 2 : index
    %c0_83 = arith.constant 0 : index
    %c0_84 = arith.constant 0 : index
    %111 = vector.load %arg3[%c2_82, %c0_83, %c0_84] : memref<7x8x69xf32, #tpu.memory_space<vmem>>, vector<1x8x69xf32>
    %112 = vector.shape_cast %111 : vector<1x8x69xf32> to vector<8x69xf32>
    %113 = arith.mulf %110, %112 : vector<8x69xf32>
    %114 = vector.extract_strided_slice %113 {offsets = [0, 0], sizes = [1, 69], strides = [1, 1]} : vector<8x69xf32> to vector<1x69xf32>
    %115 = vector.extract_strided_slice %113 {offsets = [1, 0], sizes = [1, 69], strides = [1, 1]} : vector<8x69xf32> to vector<1x69xf32>
    %116 = vector.extract_strided_slice %113 {offsets = [2, 0], sizes = [1, 69], strides = [1, 1]} : vector<8x69xf32> to vector<1x69xf32>
    %117 = vector.extract_strided_slice %113 {offsets = [3, 0], sizes = [1, 69], strides = [1, 1]} : vector<8x69xf32> to vector<1x69xf32>
    %c3_85 = arith.constant 3 : index
    %c0_86 = arith.constant 0 : index
    %c0_87 = arith.constant 0 : index
    %c0_88 = arith.constant 0 : index
    %118 = vector.load %arg1[%c3_85, %c0_86, %c0_87, %c0_88] : memref<7x8x8x69xf32, #tpu.memory_space<vmem>>, vector<1x1x8x69xf32>
    %119 = vector.shape_cast %118 : vector<1x1x8x69xf32> to vector<8x69xf32>
    %120 = vector.broadcast %114 : vector<1x69xf32> to vector<8x69xf32>
    %121 = arith.mulf %119, %120 : vector<8x69xf32>
    %c3_89 = arith.constant 3 : index
    %c1_90 = arith.constant 1 : index
    %c0_91 = arith.constant 0 : index
    %c0_92 = arith.constant 0 : index
    %122 = vector.load %arg1[%c3_89, %c1_90, %c0_91, %c0_92] : memref<7x8x8x69xf32, #tpu.memory_space<vmem>>, vector<1x1x8x69xf32>
    %123 = vector.shape_cast %122 : vector<1x1x8x69xf32> to vector<8x69xf32>
    %124 = vector.broadcast %115 : vector<1x69xf32> to vector<8x69xf32>
    %125 = arith.mulf %123, %124 : vector<8x69xf32>
    %c3_93 = arith.constant 3 : index
    %c2_94 = arith.constant 2 : index
    %c0_95 = arith.constant 0 : index
    %c0_96 = arith.constant 0 : index
    %126 = vector.load %arg1[%c3_93, %c2_94, %c0_95, %c0_96] : memref<7x8x8x69xf32, #tpu.memory_space<vmem>>, vector<1x1x8x69xf32>
    %127 = vector.shape_cast %126 : vector<1x1x8x69xf32> to vector<8x69xf32>
    %128 = vector.broadcast %116 : vector<1x69xf32> to vector<8x69xf32>
    %129 = arith.mulf %127, %128 : vector<8x69xf32>
    %c3_97 = arith.constant 3 : index
    %c3_98 = arith.constant 3 : index
    %c0_99 = arith.constant 0 : index
    %c0_100 = arith.constant 0 : index
    %130 = vector.load %arg1[%c3_97, %c3_98, %c0_99, %c0_100] : memref<7x8x8x69xf32, #tpu.memory_space<vmem>>, vector<1x1x8x69xf32>
    %131 = vector.shape_cast %130 : vector<1x1x8x69xf32> to vector<8x69xf32>
    %132 = vector.broadcast %117 : vector<1x69xf32> to vector<8x69xf32>
    %133 = arith.mulf %131, %132 : vector<8x69xf32>
    %134 = arith.addf %121, %125 : vector<8x69xf32>
    %135 = arith.addf %129, %133 : vector<8x69xf32>
    %136 = arith.addf %134, %135 : vector<8x69xf32>
    %c0_101 = arith.constant 0 : index
    %c0_102 = arith.constant 0 : index
    %137 = vector.load %arg4[%c0_101, %c0_102] : memref<69x69xf32, #tpu.memory_space<vmem>>, vector<69x69xf32>
    %cst_103 = arith.constant dense<0.000000e+00> : vector<8x69xf32>
    %138 = tpu.matmul %136, %137, %cst_103 {dimension_numbers = #tpu.dot_dimension_numbers<[1], [0], [0], [1], [0, 0, 1, 1], [], []>} : vector<8x69xf32>, vector<69x69xf32>, vector<8x69xf32> -> vector<8x69xf32>
    %c3_104 = arith.constant 3 : index
    %c0_105 = arith.constant 0 : index
    %c0_106 = arith.constant 0 : index
    %139 = vector.load %arg2[%c3_104, %c0_105, %c0_106] : memref<7x8x69xf32, #tpu.memory_space<vmem>>, vector<1x8x69xf32>
    %140 = vector.shape_cast %139 : vector<1x8x69xf32> to vector<8x69xf32>
    %141 = arith.addf %138, %140 : vector<8x69xf32>
    %cst_107 = arith.constant 0.000000e+00 : f32
    %142 = vector.broadcast %cst_107 : f32 to vector<8x69xf32>
    %143 = arith.cmpf ogt, %141, %142 : vector<8x69xf32>
    %cst_108 = arith.constant 0.00999999977 : f32
    %144 = vector.broadcast %cst_108 : f32 to vector<8x69xf32>
    %145 = arith.mulf %144, %141 : vector<8x69xf32>
    %146 = arith.select %143, %141, %145 : vector<8x69xi1>, vector<8x69xf32>
    %c3_109 = arith.constant 3 : index
    %c0_110 = arith.constant 0 : index
    %c0_111 = arith.constant 0 : index
    %147 = vector.load %arg3[%c3_109, %c0_110, %c0_111] : memref<7x8x69xf32, #tpu.memory_space<vmem>>, vector<1x8x69xf32>
    %148 = vector.shape_cast %147 : vector<1x8x69xf32> to vector<8x69xf32>
    %149 = arith.mulf %146, %148 : vector<8x69xf32>
    %150 = vector.extract_strided_slice %149 {offsets = [0, 0], sizes = [1, 69], strides = [1, 1]} : vector<8x69xf32> to vector<1x69xf32>
    %151 = vector.extract_strided_slice %149 {offsets = [1, 0], sizes = [1, 69], strides = [1, 1]} : vector<8x69xf32> to vector<1x69xf32>
    %152 = vector.extract_strided_slice %149 {offsets = [2, 0], sizes = [1, 69], strides = [1, 1]} : vector<8x69xf32> to vector<1x69xf32>
    %153 = vector.extract_strided_slice %149 {offsets = [3, 0], sizes = [1, 69], strides = [1, 1]} : vector<8x69xf32> to vector<1x69xf32>
    %c4_112 = arith.constant 4 : index
    %c0_113 = arith.constant 0 : index
    %c0_114 = arith.constant 0 : index
    %c0_115 = arith.constant 0 : index
    %154 = vector.load %arg1[%c4_112, %c0_113, %c0_114, %c0_115] : memref<7x8x8x69xf32, #tpu.memory_space<vmem>>, vector<1x1x8x69xf32>
    %155 = vector.shape_cast %154 : vector<1x1x8x69xf32> to vector<8x69xf32>
    %156 = vector.broadcast %150 : vector<1x69xf32> to vector<8x69xf32>
    %157 = arith.mulf %155, %156 : vector<8x69xf32>
    %c4_116 = arith.constant 4 : index
    %c1_117 = arith.constant 1 : index
    %c0_118 = arith.constant 0 : index
    %c0_119 = arith.constant 0 : index
    %158 = vector.load %arg1[%c4_116, %c1_117, %c0_118, %c0_119] : memref<7x8x8x69xf32, #tpu.memory_space<vmem>>, vector<1x1x8x69xf32>
    %159 = vector.shape_cast %158 : vector<1x1x8x69xf32> to vector<8x69xf32>
    %160 = vector.broadcast %151 : vector<1x69xf32> to vector<8x69xf32>
    %161 = arith.mulf %159, %160 : vector<8x69xf32>
    %c4_120 = arith.constant 4 : index
    %c2_121 = arith.constant 2 : index
    %c0_122 = arith.constant 0 : index
    %c0_123 = arith.constant 0 : index
    %162 = vector.load %arg1[%c4_120, %c2_121, %c0_122, %c0_123] : memref<7x8x8x69xf32, #tpu.memory_space<vmem>>, vector<1x1x8x69xf32>
    %163 = vector.shape_cast %162 : vector<1x1x8x69xf32> to vector<8x69xf32>
    %164 = vector.broadcast %152 : vector<1x69xf32> to vector<8x69xf32>
    %165 = arith.mulf %163, %164 : vector<8x69xf32>
    %c4_124 = arith.constant 4 : index
    %c3_125 = arith.constant 3 : index
    %c0_126 = arith.constant 0 : index
    %c0_127 = arith.constant 0 : index
    %166 = vector.load %arg1[%c4_124, %c3_125, %c0_126, %c0_127] : memref<7x8x8x69xf32, #tpu.memory_space<vmem>>, vector<1x1x8x69xf32>
    %167 = vector.shape_cast %166 : vector<1x1x8x69xf32> to vector<8x69xf32>
    %168 = vector.broadcast %153 : vector<1x69xf32> to vector<8x69xf32>
    %169 = arith.mulf %167, %168 : vector<8x69xf32>
    %170 = arith.addf %157, %161 : vector<8x69xf32>
    %171 = arith.addf %165, %169 : vector<8x69xf32>
    %172 = arith.addf %170, %171 : vector<8x69xf32>
    %c4_128 = arith.constant 4 : index
    %c0_129 = arith.constant 0 : index
    %c0_130 = arith.constant 0 : index
    %173 = vector.load %arg2[%c4_128, %c0_129, %c0_130] : memref<7x8x69xf32, #tpu.memory_space<vmem>>, vector<1x8x69xf32>
    %174 = vector.shape_cast %173 : vector<1x8x69xf32> to vector<8x69xf32>
    %175 = arith.addf %172, %174 : vector<8x69xf32>
    %cst_131 = arith.constant 0.000000e+00 : f32
    %176 = vector.broadcast %cst_131 : f32 to vector<8x69xf32>
    %177 = arith.cmpf ogt, %175, %176 : vector<8x69xf32>
    %cst_132 = arith.constant 0.00999999977 : f32
    %178 = vector.broadcast %cst_132 : f32 to vector<8x69xf32>
    %179 = arith.mulf %178, %175 : vector<8x69xf32>
    %180 = arith.select %177, %175, %179 : vector<8x69xi1>, vector<8x69xf32>
    %c4_133 = arith.constant 4 : index
    %c0_134 = arith.constant 0 : index
    %c0_135 = arith.constant 0 : index
    %181 = vector.load %arg3[%c4_133, %c0_134, %c0_135] : memref<7x8x69xf32, #tpu.memory_space<vmem>>, vector<1x8x69xf32>
    %182 = vector.shape_cast %181 : vector<1x8x69xf32> to vector<8x69xf32>
    %183 = arith.mulf %180, %182 : vector<8x69xf32>
    %184 = vector.extract_strided_slice %183 {offsets = [0, 0], sizes = [1, 69], strides = [1, 1]} : vector<8x69xf32> to vector<1x69xf32>
    %185 = vector.extract_strided_slice %183 {offsets = [1, 0], sizes = [1, 69], strides = [1, 1]} : vector<8x69xf32> to vector<1x69xf32>
    %186 = vector.extract_strided_slice %183 {offsets = [2, 0], sizes = [1, 69], strides = [1, 1]} : vector<8x69xf32> to vector<1x69xf32>
    %187 = vector.extract_strided_slice %183 {offsets = [3, 0], sizes = [1, 69], strides = [1, 1]} : vector<8x69xf32> to vector<1x69xf32>
    %c5_136 = arith.constant 5 : index
    %c0_137 = arith.constant 0 : index
    %c0_138 = arith.constant 0 : index
    %c0_139 = arith.constant 0 : index
    %188 = vector.load %arg1[%c5_136, %c0_137, %c0_138, %c0_139] : memref<7x8x8x69xf32, #tpu.memory_space<vmem>>, vector<1x1x8x69xf32>
    %189 = vector.shape_cast %188 : vector<1x1x8x69xf32> to vector<8x69xf32>
    %190 = vector.broadcast %184 : vector<1x69xf32> to vector<8x69xf32>
    %191 = arith.mulf %189, %190 : vector<8x69xf32>
    %c5_140 = arith.constant 5 : index
    %c1_141 = arith.constant 1 : index
    %c0_142 = arith.constant 0 : index
    %c0_143 = arith.constant 0 : index
    %192 = vector.load %arg1[%c5_140, %c1_141, %c0_142, %c0_143] : memref<7x8x8x69xf32, #tpu.memory_space<vmem>>, vector<1x1x8x69xf32>
    %193 = vector.shape_cast %192 : vector<1x1x8x69xf32> to vector<8x69xf32>
    %194 = vector.broadcast %185 : vector<1x69xf32> to vector<8x69xf32>
    %195 = arith.mulf %193, %194 : vector<8x69xf32>
    %c5_144 = arith.constant 5 : index
    %c2_145 = arith.constant 2 : index
    %c0_146 = arith.constant 0 : index
    %c0_147 = arith.constant 0 : index
    %196 = vector.load %arg1[%c5_144, %c2_145, %c0_146, %c0_147] : memref<7x8x8x69xf32, #tpu.memory_space<vmem>>, vector<1x1x8x69xf32>
    %197 = vector.shape_cast %196 : vector<1x1x8x69xf32> to vector<8x69xf32>
    %198 = vector.broadcast %186 : vector<1x69xf32> to vector<8x69xf32>
    %199 = arith.mulf %197, %198 : vector<8x69xf32>
    %c5_148 = arith.constant 5 : index
    %c3_149 = arith.constant 3 : index
    %c0_150 = arith.constant 0 : index
    %c0_151 = arith.constant 0 : index
    %200 = vector.load %arg1[%c5_148, %c3_149, %c0_150, %c0_151] : memref<7x8x8x69xf32, #tpu.memory_space<vmem>>, vector<1x1x8x69xf32>
    %201 = vector.shape_cast %200 : vector<1x1x8x69xf32> to vector<8x69xf32>
    %202 = vector.broadcast %187 : vector<1x69xf32> to vector<8x69xf32>
    %203 = arith.mulf %201, %202 : vector<8x69xf32>
    %204 = arith.addf %191, %195 : vector<8x69xf32>
    %205 = arith.addf %199, %203 : vector<8x69xf32>
    %206 = arith.addf %204, %205 : vector<8x69xf32>
    %c5_152 = arith.constant 5 : index
    %c0_153 = arith.constant 0 : index
    %c0_154 = arith.constant 0 : index
    %207 = vector.load %arg2[%c5_152, %c0_153, %c0_154] : memref<7x8x69xf32, #tpu.memory_space<vmem>>, vector<1x8x69xf32>
    %208 = vector.shape_cast %207 : vector<1x8x69xf32> to vector<8x69xf32>
    %209 = arith.addf %206, %208 : vector<8x69xf32>
    %cst_155 = arith.constant 0.000000e+00 : f32
    %210 = vector.broadcast %cst_155 : f32 to vector<8x69xf32>
    %211 = arith.cmpf ogt, %209, %210 : vector<8x69xf32>
    %cst_156 = arith.constant 0.00999999977 : f32
    %212 = vector.broadcast %cst_156 : f32 to vector<8x69xf32>
    %213 = arith.mulf %212, %209 : vector<8x69xf32>
    %214 = arith.select %211, %209, %213 : vector<8x69xi1>, vector<8x69xf32>
    %c5_157 = arith.constant 5 : index
    %c0_158 = arith.constant 0 : index
    %c0_159 = arith.constant 0 : index
    %215 = vector.load %arg3[%c5_157, %c0_158, %c0_159] : memref<7x8x69xf32, #tpu.memory_space<vmem>>, vector<1x8x69xf32>
    %216 = vector.shape_cast %215 : vector<1x8x69xf32> to vector<8x69xf32>
    %217 = arith.mulf %214, %216 : vector<8x69xf32>
    %218 = vector.extract_strided_slice %217 {offsets = [0, 0], sizes = [1, 69], strides = [1, 1]} : vector<8x69xf32> to vector<1x69xf32>
    %219 = vector.extract_strided_slice %217 {offsets = [1, 0], sizes = [1, 69], strides = [1, 1]} : vector<8x69xf32> to vector<1x69xf32>
    %c6 = arith.constant 6 : index
    %c0_160 = arith.constant 0 : index
    %c0_161 = arith.constant 0 : index
    %c0_162 = arith.constant 0 : index
    %220 = vector.load %arg1[%c6, %c0_160, %c0_161, %c0_162] : memref<7x8x8x69xf32, #tpu.memory_space<vmem>>, vector<1x1x8x69xf32>
    %221 = vector.shape_cast %220 : vector<1x1x8x69xf32> to vector<8x69xf32>
    %222 = vector.broadcast %218 : vector<1x69xf32> to vector<8x69xf32>
    %223 = arith.mulf %221, %222 : vector<8x69xf32>
    %c6_163 = arith.constant 6 : index
    %c1_164 = arith.constant 1 : index
    %c0_165 = arith.constant 0 : index
    %c0_166 = arith.constant 0 : index
    %224 = vector.load %arg1[%c6_163, %c1_164, %c0_165, %c0_166] : memref<7x8x8x69xf32, #tpu.memory_space<vmem>>, vector<1x1x8x69xf32>
    %225 = vector.shape_cast %224 : vector<1x1x8x69xf32> to vector<8x69xf32>
    %226 = vector.broadcast %219 : vector<1x69xf32> to vector<8x69xf32>
    %227 = arith.mulf %225, %226 : vector<8x69xf32>
    %228 = arith.addf %223, %227 : vector<8x69xf32>
    %c6_167 = arith.constant 6 : index
    %c0_168 = arith.constant 0 : index
    %c0_169 = arith.constant 0 : index
    %229 = vector.load %arg2[%c6_167, %c0_168, %c0_169] : memref<7x8x69xf32, #tpu.memory_space<vmem>>, vector<1x8x69xf32>
    %230 = vector.shape_cast %229 : vector<1x8x69xf32> to vector<8x69xf32>
    %231 = arith.addf %228, %230 : vector<8x69xf32>
    %c6_170 = arith.constant 6 : index
    %c0_171 = arith.constant 0 : index
    %c0_172 = arith.constant 0 : index
    %232 = vector.load %arg3[%c6_170, %c0_171, %c0_172] : memref<7x8x69xf32, #tpu.memory_space<vmem>>, vector<1x8x69xf32>
    %233 = vector.shape_cast %232 : vector<1x8x69xf32> to vector<8x69xf32>
    %234 = arith.mulf %231, %233 : vector<8x69xf32>
    %235 = vector.extract_strided_slice %234 {offsets = [0, 0], sizes = [1, 69], strides = [1, 1]} : vector<8x69xf32> to vector<1x69xf32>
    %236 = math.absf %235 : vector<1x69xf32>
    %c0_173 = arith.constant 0 : index
    %c0_174 = arith.constant 0 : index
    %237 = vector.load %arg5[%c0_173, %c0_174] : memref<3x69xf32, #tpu.memory_space<vmem>>, vector<1x69xf32>
    %c1_175 = arith.constant 1 : index
    %c0_176 = arith.constant 0 : index
    %238 = vector.load %arg5[%c1_175, %c0_176] : memref<3x69xf32, #tpu.memory_space<vmem>>, vector<1x69xf32>
    %c2_177 = arith.constant 2 : index
    %c0_178 = arith.constant 0 : index
    %239 = vector.load %arg5[%c2_177, %c0_178] : memref<3x69xf32, #tpu.memory_space<vmem>>, vector<1x69xf32>
    %240 = arith.cmpf olt, %236, %237 : vector<1x69xf32>
    %cst_179 = arith.constant 0.00999999977 : f32
    %241 = vector.broadcast %cst_179 : f32 to vector<1x69xf32>
    %242 = arith.mulf %241, %236 : vector<1x69xf32>
    %243 = arith.addf %242, %238 : vector<1x69xf32>
    %244 = arith.select %240, %236, %243 : vector<1x69xi1>, vector<1x69xf32>
    %245 = arith.mulf %244, %239 : vector<1x69xf32>
    %c0_180 = arith.constant 0 : index
    %c0_181 = arith.constant 0 : index
    %246 = vector.load %arg11[%c0_180, %c0_181] : memref<1x69xf32, #tpu.memory_space<vmem>>, vector<1x69xf32>
    tpu.vector_store %arg11[%c0_180, %c0_181], %245 {strides = array<i32>} : memref<1x69xf32, #tpu.memory_space<vmem>>, vector<1x69xf32>,
    %c0_182 = arith.constant 0 : index
    %c23 = arith.constant 23 : index
    %247 = vector.load %arg11[%c0_182, %c23] : memref<1x69xf32, #tpu.memory_space<vmem>>, vector<1x23xf32>
    %c1_183 = arith.constant 1 : index
    %c0_184 = arith.constant 0 : index
    %248 = vector.load %arg10[%c1_183, %c0_184] : memref<4x23xf32, #tpu.memory_space<vmem>>, vector<1x23xf32>
    tpu.vector_store %arg10[%c1_183, %c0_184], %247 {strides = array<i32>} : memref<4x23xf32, #tpu.memory_space<vmem>>, vector<1x23xf32>,
    %c0_185 = arith.constant 0 : index
    %c46 = arith.constant 46 : index
    %249 = vector.load %arg11[%c0_185, %c46] : memref<1x69xf32, #tpu.memory_space<vmem>>, vector<1x23xf32>
    %c2_186 = arith.constant 2 : index
    %c0_187 = arith.constant 0 : index
    %250 = vector.load %arg10[%c2_186, %c0_187] : memref<4x23xf32, #tpu.memory_space<vmem>>, vector<1x23xf32>
    tpu.vector_store %arg10[%c2_186, %c0_187], %249 {strides = array<i32>} : memref<4x23xf32, #tpu.memory_space<vmem>>, vector<1x23xf32>,
    %c0_188 = arith.constant 0 : index
    %c0_189 = arith.constant 0 : index
    %251 = vector.load %arg11[%c0_188, %c0_189] : memref<1x69xf32, #tpu.memory_space<vmem>>, vector<1x23xf32>
    %c3_190 = arith.constant 3 : index
    %c0_191 = arith.constant 0 : index
    %252 = vector.load %arg10[%c3_190, %c0_191] : memref<4x23xf32, #tpu.memory_space<vmem>>, vector<1x23xf32>
    tpu.vector_store %arg10[%c3_190, %c0_191], %251 {strides = array<i32>} : memref<4x23xf32, #tpu.memory_space<vmem>>, vector<1x23xf32>,
    %c0_192 = arith.constant 0 : index
    %c0_193 = arith.constant 0 : index
    %253 = vector.load %arg11[%c0_192, %c0_193] : memref<1x69xf32, #tpu.memory_space<vmem>>, vector<1x23xf32>
    %c0_194 = arith.constant 0 : index
    %c23_195 = arith.constant 23 : index
    %254 = vector.load %arg11[%c0_194, %c23_195] : memref<1x69xf32, #tpu.memory_space<vmem>>, vector<1x23xf32>
    %c0_196 = arith.constant 0 : index
    %c46_197 = arith.constant 46 : index
    %255 = vector.load %arg11[%c0_196, %c46_197] : memref<1x69xf32, #tpu.memory_space<vmem>>, vector<1x23xf32>
    %c0_198 = arith.constant 0 : index
    %c0_199 = arith.constant 0 : index
    %c0_200 = arith.constant 0 : index
    %c0_201 = arith.constant 0 : index
    %256 = vector.load %arg6[%c0_198, %c0_199, %c0_200, %c0_201] : memref<7x8x8x23xf32, #tpu.memory_space<vmem>>, vector<1x1x8x23xf32>
    %257 = vector.shape_cast %256 : vector<1x1x8x23xf32> to vector<8x23xf32>
    %258 = vector.broadcast %253 : vector<1x23xf32> to vector<8x23xf32>
    %259 = arith.mulf %257, %258 : vector<8x23xf32>
    %c0_202 = arith.constant 0 : index
    %c1_203 = arith.constant 1 : index
    %c0_204 = arith.constant 0 : index
    %c0_205 = arith.constant 0 : index
    %260 = vector.load %arg6[%c0_202, %c1_203, %c0_204, %c0_205] : memref<7x8x8x23xf32, #tpu.memory_space<vmem>>, vector<1x1x8x23xf32>
    %261 = vector.shape_cast %260 : vector<1x1x8x23xf32> to vector<8x23xf32>
    %262 = vector.broadcast %254 : vector<1x23xf32> to vector<8x23xf32>
    %263 = arith.mulf %261, %262 : vector<8x23xf32>
    %c0_206 = arith.constant 0 : index
    %c2_207 = arith.constant 2 : index
    %c0_208 = arith.constant 0 : index
    %c0_209 = arith.constant 0 : index
    %264 = vector.load %arg6[%c0_206, %c2_207, %c0_208, %c0_209] : memref<7x8x8x23xf32, #tpu.memory_space<vmem>>, vector<1x1x8x23xf32>
    %265 = vector.shape_cast %264 : vector<1x1x8x23xf32> to vector<8x23xf32>
    %266 = vector.broadcast %255 : vector<1x23xf32> to vector<8x23xf32>
    %267 = arith.mulf %265, %266 : vector<8x23xf32>
    %268 = arith.addf %259, %263 : vector<8x23xf32>
    %269 = arith.addf %268, %267 : vector<8x23xf32>
    %c0_210 = arith.constant 0 : index
    %c0_211 = arith.constant 0 : index
    %c0_212 = arith.constant 0 : index
    %270 = vector.load %arg7[%c0_210, %c0_211, %c0_212] : memref<7x8x23xf32, #tpu.memory_space<vmem>>, vector<1x8x23xf32>
    %271 = vector.shape_cast %270 : vector<1x8x23xf32> to vector<8x23xf32>
    %272 = arith.addf %269, %271 : vector<8x23xf32>
    %cst_213 = arith.constant 0.000000e+00 : f32
    %273 = vector.broadcast %cst_213 : f32 to vector<8x23xf32>
    %274 = arith.cmpf ogt, %272, %273 : vector<8x23xf32>
    %cst_214 = arith.constant 0.00999999977 : f32
    %275 = vector.broadcast %cst_214 : f32 to vector<8x23xf32>
    %276 = arith.mulf %275, %272 : vector<8x23xf32>
    %277 = arith.select %274, %272, %276 : vector<8x23xi1>, vector<8x23xf32>
    %c0_215 = arith.constant 0 : index
    %c0_216 = arith.constant 0 : index
    %c0_217 = arith.constant 0 : index
    %278 = vector.load %arg8[%c0_215, %c0_216, %c0_217] : memref<7x8x23xf32, #tpu.memory_space<vmem>>, vector<1x8x23xf32>
    %279 = vector.shape_cast %278 : vector<1x8x23xf32> to vector<8x23xf32>
    %280 = arith.mulf %277, %279 : vector<8x23xf32>
    %281 = vector.extract_strided_slice %280 {offsets = [0, 0], sizes = [1, 23], strides = [1, 1]} : vector<8x23xf32> to vector<1x23xf32>
    %282 = vector.extract_strided_slice %280 {offsets = [1, 0], sizes = [1, 23], strides = [1, 1]} : vector<8x23xf32> to vector<1x23xf32>
    %283 = vector.extract_strided_slice %280 {offsets = [2, 0], sizes = [1, 23], strides = [1, 1]} : vector<8x23xf32> to vector<1x23xf32>
    %284 = vector.extract_strided_slice %280 {offsets = [3, 0], sizes = [1, 23], strides = [1, 1]} : vector<8x23xf32> to vector<1x23xf32>
    %c1_218 = arith.constant 1 : index
    %c0_219 = arith.constant 0 : index
    %c0_220 = arith.constant 0 : index
    %c0_221 = arith.constant 0 : index
    %285 = vector.load %arg6[%c1_218, %c0_219, %c0_220, %c0_221] : memref<7x8x8x23xf32, #tpu.memory_space<vmem>>, vector<1x1x8x23xf32>
    %286 = vector.shape_cast %285 : vector<1x1x8x23xf32> to vector<8x23xf32>
    %287 = vector.broadcast %281 : vector<1x23xf32> to vector<8x23xf32>
    %288 = arith.mulf %286, %287 : vector<8x23xf32>
    %c1_222 = arith.constant 1 : index
    %c1_223 = arith.constant 1 : index
    %c0_224 = arith.constant 0 : index
    %c0_225 = arith.constant 0 : index
    %289 = vector.load %arg6[%c1_222, %c1_223, %c0_224, %c0_225] : memref<7x8x8x23xf32, #tpu.memory_space<vmem>>, vector<1x1x8x23xf32>
    %290 = vector.shape_cast %289 : vector<1x1x8x23xf32> to vector<8x23xf32>
    %291 = vector.broadcast %282 : vector<1x23xf32> to vector<8x23xf32>
    %292 = arith.mulf %290, %291 : vector<8x23xf32>
    %c1_226 = arith.constant 1 : index
    %c2_227 = arith.constant 2 : index
    %c0_228 = arith.constant 0 : index
    %c0_229 = arith.constant 0 : index
    %293 = vector.load %arg6[%c1_226, %c2_227, %c0_228, %c0_229] : memref<7x8x8x23xf32, #tpu.memory_space<vmem>>, vector<1x1x8x23xf32>
    %294 = vector.shape_cast %293 : vector<1x1x8x23xf32> to vector<8x23xf32>
    %295 = vector.broadcast %283 : vector<1x23xf32> to vector<8x23xf32>
    %296 = arith.mulf %294, %295 : vector<8x23xf32>
    %c1_230 = arith.constant 1 : index
    %c3_231 = arith.constant 3 : index
    %c0_232 = arith.constant 0 : index
    %c0_233 = arith.constant 0 : index
    %297 = vector.load %arg6[%c1_230, %c3_231, %c0_232, %c0_233] : memref<7x8x8x23xf32, #tpu.memory_space<vmem>>, vector<1x1x8x23xf32>
    %298 = vector.shape_cast %297 : vector<1x1x8x23xf32> to vector<8x23xf32>
    %299 = vector.broadcast %284 : vector<1x23xf32> to vector<8x23xf32>
    %300 = arith.mulf %298, %299 : vector<8x23xf32>
    %301 = arith.addf %288, %292 : vector<8x23xf32>
    %302 = arith.addf %296, %300 : vector<8x23xf32>
    %303 = arith.addf %301, %302 : vector<8x23xf32>
    %c1_234 = arith.constant 1 : index
    %c0_235 = arith.constant 0 : index
    %c0_236 = arith.constant 0 : index
    %304 = vector.load %arg7[%c1_234, %c0_235, %c0_236] : memref<7x8x23xf32, #tpu.memory_space<vmem>>, vector<1x8x23xf32>
    %305 = vector.shape_cast %304 : vector<1x8x23xf32> to vector<8x23xf32>
    %306 = arith.addf %303, %305 : vector<8x23xf32>
    %cst_237 = arith.constant 0.000000e+00 : f32
    %307 = vector.broadcast %cst_237 : f32 to vector<8x23xf32>
    %308 = arith.cmpf ogt, %306, %307 : vector<8x23xf32>
    %cst_238 = arith.constant 0.00999999977 : f32
    %309 = vector.broadcast %cst_238 : f32 to vector<8x23xf32>
    %310 = arith.mulf %309, %306 : vector<8x23xf32>
    %311 = arith.select %308, %306, %310 : vector<8x23xi1>, vector<8x23xf32>
    %c1_239 = arith.constant 1 : index
    %c0_240 = arith.constant 0 : index
    %c0_241 = arith.constant 0 : index
    %312 = vector.load %arg8[%c1_239, %c0_240, %c0_241] : memref<7x8x23xf32, #tpu.memory_space<vmem>>, vector<1x8x23xf32>
    %313 = vector.shape_cast %312 : vector<1x8x23xf32> to vector<8x23xf32>
    %314 = arith.mulf %311, %313 : vector<8x23xf32>
    %315 = vector.extract_strided_slice %314 {offsets = [0, 0], sizes = [1, 23], strides = [1, 1]} : vector<8x23xf32> to vector<1x23xf32>
    %316 = vector.extract_strided_slice %314 {offsets = [1, 0], sizes = [1, 23], strides = [1, 1]} : vector<8x23xf32> to vector<1x23xf32>
    %317 = vector.extract_strided_slice %314 {offsets = [2, 0], sizes = [1, 23], strides = [1, 1]} : vector<8x23xf32> to vector<1x23xf32>
    %318 = vector.extract_strided_slice %314 {offsets = [3, 0], sizes = [1, 23], strides = [1, 1]} : vector<8x23xf32> to vector<1x23xf32>
    %c2_242 = arith.constant 2 : index
    %c0_243 = arith.constant 0 : index
    %c0_244 = arith.constant 0 : index
    %c0_245 = arith.constant 0 : index
    %319 = vector.load %arg6[%c2_242, %c0_243, %c0_244, %c0_245] : memref<7x8x8x23xf32, #tpu.memory_space<vmem>>, vector<1x1x8x23xf32>
    %320 = vector.shape_cast %319 : vector<1x1x8x23xf32> to vector<8x23xf32>
    %321 = vector.broadcast %315 : vector<1x23xf32> to vector<8x23xf32>
    %322 = arith.mulf %320, %321 : vector<8x23xf32>
    %c2_246 = arith.constant 2 : index
    %c1_247 = arith.constant 1 : index
    %c0_248 = arith.constant 0 : index
    %c0_249 = arith.constant 0 : index
    %323 = vector.load %arg6[%c2_246, %c1_247, %c0_248, %c0_249] : memref<7x8x8x23xf32, #tpu.memory_space<vmem>>, vector<1x1x8x23xf32>
    %324 = vector.shape_cast %323 : vector<1x1x8x23xf32> to vector<8x23xf32>
    %325 = vector.broadcast %316 : vector<1x23xf32> to vector<8x23xf32>
    %326 = arith.mulf %324, %325 : vector<8x23xf32>
    %c2_250 = arith.constant 2 : index
    %c2_251 = arith.constant 2 : index
    %c0_252 = arith.constant 0 : index
    %c0_253 = arith.constant 0 : index
    %327 = vector.load %arg6[%c2_250, %c2_251, %c0_252, %c0_253] : memref<7x8x8x23xf32, #tpu.memory_space<vmem>>, vector<1x1x8x23xf32>
    %328 = vector.shape_cast %327 : vector<1x1x8x23xf32> to vector<8x23xf32>
    %329 = vector.broadcast %317 : vector<1x23xf32> to vector<8x23xf32>
    %330 = arith.mulf %328, %329 : vector<8x23xf32>
    %c2_254 = arith.constant 2 : index
    %c3_255 = arith.constant 3 : index
    %c0_256 = arith.constant 0 : index
    %c0_257 = arith.constant 0 : index
    %331 = vector.load %arg6[%c2_254, %c3_255, %c0_256, %c0_257] : memref<7x8x8x23xf32, #tpu.memory_space<vmem>>, vector<1x1x8x23xf32>
    %332 = vector.shape_cast %331 : vector<1x1x8x23xf32> to vector<8x23xf32>
    %333 = vector.broadcast %318 : vector<1x23xf32> to vector<8x23xf32>
    %334 = arith.mulf %332, %333 : vector<8x23xf32>
    %335 = arith.addf %322, %326 : vector<8x23xf32>
    %336 = arith.addf %330, %334 : vector<8x23xf32>
    %337 = arith.addf %335, %336 : vector<8x23xf32>
    %c2_258 = arith.constant 2 : index
    %c0_259 = arith.constant 0 : index
    %c0_260 = arith.constant 0 : index
    %338 = vector.load %arg7[%c2_258, %c0_259, %c0_260] : memref<7x8x23xf32, #tpu.memory_space<vmem>>, vector<1x8x23xf32>
    %339 = vector.shape_cast %338 : vector<1x8x23xf32> to vector<8x23xf32>
    %340 = arith.addf %337, %339 : vector<8x23xf32>
    %cst_261 = arith.constant 0.000000e+00 : f32
    %341 = vector.broadcast %cst_261 : f32 to vector<8x23xf32>
    %342 = arith.cmpf ogt, %340, %341 : vector<8x23xf32>
    %cst_262 = arith.constant 0.00999999977 : f32
    %343 = vector.broadcast %cst_262 : f32 to vector<8x23xf32>
    %344 = arith.mulf %343, %340 : vector<8x23xf32>
    %345 = arith.select %342, %340, %344 : vector<8x23xi1>, vector<8x23xf32>
    %c2_263 = arith.constant 2 : index
    %c0_264 = arith.constant 0 : index
    %c0_265 = arith.constant 0 : index
    %346 = vector.load %arg8[%c2_263, %c0_264, %c0_265] : memref<7x8x23xf32, #tpu.memory_space<vmem>>, vector<1x8x23xf32>
    %347 = vector.shape_cast %346 : vector<1x8x23xf32> to vector<8x23xf32>
    %348 = arith.mulf %345, %347 : vector<8x23xf32>
    %349 = vector.extract_strided_slice %348 {offsets = [0, 0], sizes = [1, 23], strides = [1, 1]} : vector<8x23xf32> to vector<1x23xf32>
    %350 = vector.extract_strided_slice %348 {offsets = [1, 0], sizes = [1, 23], strides = [1, 1]} : vector<8x23xf32> to vector<1x23xf32>
    %351 = vector.extract_strided_slice %348 {offsets = [2, 0], sizes = [1, 23], strides = [1, 1]} : vector<8x23xf32> to vector<1x23xf32>
    %352 = vector.extract_strided_slice %348 {offsets = [3, 0], sizes = [1, 23], strides = [1, 1]} : vector<8x23xf32> to vector<1x23xf32>
    %c3_266 = arith.constant 3 : index
    %c0_267 = arith.constant 0 : index
    %c0_268 = arith.constant 0 : index
    %c0_269 = arith.constant 0 : index
    %353 = vector.load %arg6[%c3_266, %c0_267, %c0_268, %c0_269] : memref<7x8x8x23xf32, #tpu.memory_space<vmem>>, vector<1x1x8x23xf32>
    %354 = vector.shape_cast %353 : vector<1x1x8x23xf32> to vector<8x23xf32>
    %355 = vector.broadcast %349 : vector<1x23xf32> to vector<8x23xf32>
    %356 = arith.mulf %354, %355 : vector<8x23xf32>
    %c3_270 = arith.constant 3 : index
    %c1_271 = arith.constant 1 : index
    %c0_272 = arith.constant 0 : index
    %c0_273 = arith.constant 0 : index
    %357 = vector.load %arg6[%c3_270, %c1_271, %c0_272, %c0_273] : memref<7x8x8x23xf32, #tpu.memory_space<vmem>>, vector<1x1x8x23xf32>
    %358 = vector.shape_cast %357 : vector<1x1x8x23xf32> to vector<8x23xf32>
    %359 = vector.broadcast %350 : vector<1x23xf32> to vector<8x23xf32>
    %360 = arith.mulf %358, %359 : vector<8x23xf32>
    %c3_274 = arith.constant 3 : index
    %c2_275 = arith.constant 2 : index
    %c0_276 = arith.constant 0 : index
    %c0_277 = arith.constant 0 : index
    %361 = vector.load %arg6[%c3_274, %c2_275, %c0_276, %c0_277] : memref<7x8x8x23xf32, #tpu.memory_space<vmem>>, vector<1x1x8x23xf32>
    %362 = vector.shape_cast %361 : vector<1x1x8x23xf32> to vector<8x23xf32>
    %363 = vector.broadcast %351 : vector<1x23xf32> to vector<8x23xf32>
    %364 = arith.mulf %362, %363 : vector<8x23xf32>
    %c3_278 = arith.constant 3 : index
    %c3_279 = arith.constant 3 : index
    %c0_280 = arith.constant 0 : index
    %c0_281 = arith.constant 0 : index
    %365 = vector.load %arg6[%c3_278, %c3_279, %c0_280, %c0_281] : memref<7x8x8x23xf32, #tpu.memory_space<vmem>>, vector<1x1x8x23xf32>
    %366 = vector.shape_cast %365 : vector<1x1x8x23xf32> to vector<8x23xf32>
    %367 = vector.broadcast %352 : vector<1x23xf32> to vector<8x23xf32>
    %368 = arith.mulf %366, %367 : vector<8x23xf32>
    %369 = arith.addf %356, %360 : vector<8x23xf32>
    %370 = arith.addf %364, %368 : vector<8x23xf32>
    %371 = arith.addf %369, %370 : vector<8x23xf32>
    %c0_282 = arith.constant 0 : index
    %c0_283 = arith.constant 0 : index
    %372 = vector.load %arg9[%c0_282, %c0_283] : memref<23x23xf32, #tpu.memory_space<vmem>>, vector<23x23xf32>
    %cst_284 = arith.constant dense<0.000000e+00> : vector<8x23xf32>
    %373 = tpu.matmul %371, %372, %cst_284 {dimension_numbers = #tpu.dot_dimension_numbers<[1], [0], [0], [1], [0, 0, 1, 1], [], []>} : vector<8x23xf32>, vector<23x23xf32>, vector<8x23xf32> -> vector<8x23xf32>
    %c3_285 = arith.constant 3 : index
    %c0_286 = arith.constant 0 : index
    %c0_287 = arith.constant 0 : index
    %374 = vector.load %arg7[%c3_285, %c0_286, %c0_287] : memref<7x8x23xf32, #tpu.memory_space<vmem>>, vector<1x8x23xf32>
    %375 = vector.shape_cast %374 : vector<1x8x23xf32> to vector<8x23xf32>
    %376 = arith.addf %373, %375 : vector<8x23xf32>
    %cst_288 = arith.constant 0.000000e+00 : f32
    %377 = vector.broadcast %cst_288 : f32 to vector<8x23xf32>
    %378 = arith.cmpf ogt, %376, %377 : vector<8x23xf32>
    %cst_289 = arith.constant 0.00999999977 : f32
    %379 = vector.broadcast %cst_289 : f32 to vector<8x23xf32>
    %380 = arith.mulf %379, %376 : vector<8x23xf32>
    %381 = arith.select %378, %376, %380 : vector<8x23xi1>, vector<8x23xf32>
    %c3_290 = arith.constant 3 : index
    %c0_291 = arith.constant 0 : index
    %c0_292 = arith.constant 0 : index
    %382 = vector.load %arg8[%c3_290, %c0_291, %c0_292] : memref<7x8x23xf32, #tpu.memory_space<vmem>>, vector<1x8x23xf32>
    %383 = vector.shape_cast %382 : vector<1x8x23xf32> to vector<8x23xf32>
    %384 = arith.mulf %381, %383 : vector<8x23xf32>
    %385 = vector.extract_strided_slice %384 {offsets = [0, 0], sizes = [1, 23], strides = [1, 1]} : vector<8x23xf32> to vector<1x23xf32>
    %386 = vector.extract_strided_slice %384 {offsets = [1, 0], sizes = [1, 23], strides = [1, 1]} : vector<8x23xf32> to vector<1x23xf32>
    %387 = vector.extract_strided_slice %384 {offsets = [2, 0], sizes = [1, 23], strides = [1, 1]} : vector<8x23xf32> to vector<1x23xf32>
    %388 = vector.extract_strided_slice %384 {offsets = [3, 0], sizes = [1, 23], strides = [1, 1]} : vector<8x23xf32> to vector<1x23xf32>
    %c4_293 = arith.constant 4 : index
    %c0_294 = arith.constant 0 : index
    %c0_295 = arith.constant 0 : index
    %c0_296 = arith.constant 0 : index
    %389 = vector.load %arg6[%c4_293, %c0_294, %c0_295, %c0_296] : memref<7x8x8x23xf32, #tpu.memory_space<vmem>>, vector<1x1x8x23xf32>
    %390 = vector.shape_cast %389 : vector<1x1x8x23xf32> to vector<8x23xf32>
    %391 = vector.broadcast %385 : vector<1x23xf32> to vector<8x23xf32>
    %392 = arith.mulf %390, %391 : vector<8x23xf32>
    %c4_297 = arith.constant 4 : index
    %c1_298 = arith.constant 1 : index
    %c0_299 = arith.constant 0 : index
    %c0_300 = arith.constant 0 : index
    %393 = vector.load %arg6[%c4_297, %c1_298, %c0_299, %c0_300] : memref<7x8x8x23xf32, #tpu.memory_space<vmem>>, vector<1x1x8x23xf32>
    %394 = vector.shape_cast %393 : vector<1x1x8x23xf32> to vector<8x23xf32>
    %395 = vector.broadcast %386 : vector<1x23xf32> to vector<8x23xf32>
    %396 = arith.mulf %394, %395 : vector<8x23xf32>
    %c4_301 = arith.constant 4 : index
    %c2_302 = arith.constant 2 : index
    %c0_303 = arith.constant 0 : index
    %c0_304 = arith.constant 0 : index
    %397 = vector.load %arg6[%c4_301, %c2_302, %c0_303, %c0_304] : memref<7x8x8x23xf32, #tpu.memory_space<vmem>>, vector<1x1x8x23xf32>
    %398 = vector.shape_cast %397 : vector<1x1x8x23xf32> to vector<8x23xf32>
    %399 = vector.broadcast %387 : vector<1x23xf32> to vector<8x23xf32>
    %400 = arith.mulf %398, %399 : vector<8x23xf32>
    %c4_305 = arith.constant 4 : index
    %c3_306 = arith.constant 3 : index
    %c0_307 = arith.constant 0 : index
    %c0_308 = arith.constant 0 : index
    %401 = vector.load %arg6[%c4_305, %c3_306, %c0_307, %c0_308] : memref<7x8x8x23xf32, #tpu.memory_space<vmem>>, vector<1x1x8x23xf32>
    %402 = vector.shape_cast %401 : vector<1x1x8x23xf32> to vector<8x23xf32>
    %403 = vector.broadcast %388 : vector<1x23xf32> to vector<8x23xf32>
    %404 = arith.mulf %402, %403 : vector<8x23xf32>
    %405 = arith.addf %392, %396 : vector<8x23xf32>
    %406 = arith.addf %400, %404 : vector<8x23xf32>
    %407 = arith.addf %405, %406 : vector<8x23xf32>
    %c4_309 = arith.constant 4 : index
    %c0_310 = arith.constant 0 : index
    %c0_311 = arith.constant 0 : index
    %408 = vector.load %arg7[%c4_309, %c0_310, %c0_311] : memref<7x8x23xf32, #tpu.memory_space<vmem>>, vector<1x8x23xf32>
    %409 = vector.shape_cast %408 : vector<1x8x23xf32> to vector<8x23xf32>
    %410 = arith.addf %407, %409 : vector<8x23xf32>
    %cst_312 = arith.constant 0.000000e+00 : f32
    %411 = vector.broadcast %cst_312 : f32 to vector<8x23xf32>
    %412 = arith.cmpf ogt, %410, %411 : vector<8x23xf32>
    %cst_313 = arith.constant 0.00999999977 : f32
    %413 = vector.broadcast %cst_313 : f32 to vector<8x23xf32>
    %414 = arith.mulf %413, %410 : vector<8x23xf32>
    %415 = arith.select %412, %410, %414 : vector<8x23xi1>, vector<8x23xf32>
    %c4_314 = arith.constant 4 : index
    %c0_315 = arith.constant 0 : index
    %c0_316 = arith.constant 0 : index
    %416 = vector.load %arg8[%c4_314, %c0_315, %c0_316] : memref<7x8x23xf32, #tpu.memory_space<vmem>>, vector<1x8x23xf32>
    %417 = vector.shape_cast %416 : vector<1x8x23xf32> to vector<8x23xf32>
    %418 = arith.mulf %415, %417 : vector<8x23xf32>
    %419 = vector.extract_strided_slice %418 {offsets = [0, 0], sizes = [1, 23], strides = [1, 1]} : vector<8x23xf32> to vector<1x23xf32>
    %420 = vector.extract_strided_slice %418 {offsets = [1, 0], sizes = [1, 23], strides = [1, 1]} : vector<8x23xf32> to vector<1x23xf32>
    %421 = vector.extract_strided_slice %418 {offsets = [2, 0], sizes = [1, 23], strides = [1, 1]} : vector<8x23xf32> to vector<1x23xf32>
    %422 = vector.extract_strided_slice %418 {offsets = [3, 0], sizes = [1, 23], strides = [1, 1]} : vector<8x23xf32> to vector<1x23xf32>
    %c5_317 = arith.constant 5 : index
    %c0_318 = arith.constant 0 : index
    %c0_319 = arith.constant 0 : index
    %c0_320 = arith.constant 0 : index
    %423 = vector.load %arg6[%c5_317, %c0_318, %c0_319, %c0_320] : memref<7x8x8x23xf32, #tpu.memory_space<vmem>>, vector<1x1x8x23xf32>
    %424 = vector.shape_cast %423 : vector<1x1x8x23xf32> to vector<8x23xf32>
    %425 = vector.broadcast %419 : vector<1x23xf32> to vector<8x23xf32>
    %426 = arith.mulf %424, %425 : vector<8x23xf32>
    %c5_321 = arith.constant 5 : index
    %c1_322 = arith.constant 1 : index
    %c0_323 = arith.constant 0 : index
    %c0_324 = arith.constant 0 : index
    %427 = vector.load %arg6[%c5_321, %c1_322, %c0_323, %c0_324] : memref<7x8x8x23xf32, #tpu.memory_space<vmem>>, vector<1x1x8x23xf32>
    %428 = vector.shape_cast %427 : vector<1x1x8x23xf32> to vector<8x23xf32>
    %429 = vector.broadcast %420 : vector<1x23xf32> to vector<8x23xf32>
    %430 = arith.mulf %428, %429 : vector<8x23xf32>
    %c5_325 = arith.constant 5 : index
    %c2_326 = arith.constant 2 : index
    %c0_327 = arith.constant 0 : index
    %c0_328 = arith.constant 0 : index
    %431 = vector.load %arg6[%c5_325, %c2_326, %c0_327, %c0_328] : memref<7x8x8x23xf32, #tpu.memory_space<vmem>>, vector<1x1x8x23xf32>
    %432 = vector.shape_cast %431 : vector<1x1x8x23xf32> to vector<8x23xf32>
    %433 = vector.broadcast %421 : vector<1x23xf32> to vector<8x23xf32>
    %434 = arith.mulf %432, %433 : vector<8x23xf32>
    %c5_329 = arith.constant 5 : index
    %c3_330 = arith.constant 3 : index
    %c0_331 = arith.constant 0 : index
    %c0_332 = arith.constant 0 : index
    %435 = vector.load %arg6[%c5_329, %c3_330, %c0_331, %c0_332] : memref<7x8x8x23xf32, #tpu.memory_space<vmem>>, vector<1x1x8x23xf32>
    %436 = vector.shape_cast %435 : vector<1x1x8x23xf32> to vector<8x23xf32>
    %437 = vector.broadcast %422 : vector<1x23xf32> to vector<8x23xf32>
    %438 = arith.mulf %436, %437 : vector<8x23xf32>
    %439 = arith.addf %426, %430 : vector<8x23xf32>
    %440 = arith.addf %434, %438 : vector<8x23xf32>
    %441 = arith.addf %439, %440 : vector<8x23xf32>
    %c5_333 = arith.constant 5 : index
    %c0_334 = arith.constant 0 : index
    %c0_335 = arith.constant 0 : index
    %442 = vector.load %arg7[%c5_333, %c0_334, %c0_335] : memref<7x8x23xf32, #tpu.memory_space<vmem>>, vector<1x8x23xf32>
    %443 = vector.shape_cast %442 : vector<1x8x23xf32> to vector<8x23xf32>
    %444 = arith.addf %441, %443 : vector<8x23xf32>
    %cst_336 = arith.constant 0.000000e+00 : f32
    %445 = vector.broadcast %cst_336 : f32 to vector<8x23xf32>
    %446 = arith.cmpf ogt, %444, %445 : vector<8x23xf32>
    %cst_337 = arith.constant 0.00999999977 : f32
    %447 = vector.broadcast %cst_337 : f32 to vector<8x23xf32>
    %448 = arith.mulf %447, %444 : vector<8x23xf32>
    %449 = arith.select %446, %444, %448 : vector<8x23xi1>, vector<8x23xf32>
    %c5_338 = arith.constant 5 : index
    %c0_339 = arith.constant 0 : index
    %c0_340 = arith.constant 0 : index
    %450 = vector.load %arg8[%c5_338, %c0_339, %c0_340] : memref<7x8x23xf32, #tpu.memory_space<vmem>>, vector<1x8x23xf32>
    %451 = vector.shape_cast %450 : vector<1x8x23xf32> to vector<8x23xf32>
    %452 = arith.mulf %449, %451 : vector<8x23xf32>
    %453 = vector.extract_strided_slice %452 {offsets = [0, 0], sizes = [1, 23], strides = [1, 1]} : vector<8x23xf32> to vector<1x23xf32>
    %454 = vector.extract_strided_slice %452 {offsets = [1, 0], sizes = [1, 23], strides = [1, 1]} : vector<8x23xf32> to vector<1x23xf32>
    %c6_341 = arith.constant 6 : index
    %c0_342 = arith.constant 0 : index
    %c0_343 = arith.constant 0 : index
    %c0_344 = arith.constant 0 : index
    %455 = vector.load %arg6[%c6_341, %c0_342, %c0_343, %c0_344] : memref<7x8x8x23xf32, #tpu.memory_space<vmem>>, vector<1x1x8x23xf32>
    %456 = vector.shape_cast %455 : vector<1x1x8x23xf32> to vector<8x23xf32>
    %457 = vector.broadcast %453 : vector<1x23xf32> to vector<8x23xf32>
    %458 = arith.mulf %456, %457 : vector<8x23xf32>
    %c6_345 = arith.constant 6 : index
    %c1_346 = arith.constant 1 : index
    %c0_347 = arith.constant 0 : index
    %c0_348 = arith.constant 0 : index
    %459 = vector.load %arg6[%c6_345, %c1_346, %c0_347, %c0_348] : memref<7x8x8x23xf32, #tpu.memory_space<vmem>>, vector<1x1x8x23xf32>
    %460 = vector.shape_cast %459 : vector<1x1x8x23xf32> to vector<8x23xf32>
    %461 = vector.broadcast %454 : vector<1x23xf32> to vector<8x23xf32>
    %462 = arith.mulf %460, %461 : vector<8x23xf32>
    %463 = arith.addf %458, %462 : vector<8x23xf32>
    %c6_349 = arith.constant 6 : index
    %c0_350 = arith.constant 0 : index
    %c0_351 = arith.constant 0 : index
    %464 = vector.load %arg7[%c6_349, %c0_350, %c0_351] : memref<7x8x23xf32, #tpu.memory_space<vmem>>, vector<1x8x23xf32>
    %465 = vector.shape_cast %464 : vector<1x8x23xf32> to vector<8x23xf32>
    %466 = arith.addf %463, %465 : vector<8x23xf32>
    %c6_352 = arith.constant 6 : index
    %c0_353 = arith.constant 0 : index
    %c0_354 = arith.constant 0 : index
    %467 = vector.load %arg8[%c6_352, %c0_353, %c0_354] : memref<7x8x23xf32, #tpu.memory_space<vmem>>, vector<1x8x23xf32>
    %468 = vector.shape_cast %467 : vector<1x8x23xf32> to vector<8x23xf32>
    %469 = arith.mulf %466, %468 : vector<8x23xf32>
    %470 = vector.extract_strided_slice %469 {offsets = [0, 0], sizes = [1, 23], strides = [1, 1]} : vector<8x23xf32> to vector<1x23xf32>
    %cst_355 = arith.constant 0.00999999977 : f32
    %471 = vector.broadcast %cst_355 : f32 to vector<1x23xf32>
    %472 = arith.mulf %470, %471 : vector<1x23xf32>
    %473 = math.tanh %472 : vector<1x23xf32>
    %cst_356 = arith.constant 4.000000e-01 : f32
    %474 = vector.broadcast %cst_356 : f32 to vector<1x23xf32>
    %475 = arith.mulf %473, %474 : vector<1x23xf32>
    %cst_357 = arith.constant 1.000000e+00 : f32
    %476 = vector.broadcast %cst_357 : f32 to vector<1x23xf32>
    %477 = arith.addf %475, %476 : vector<1x23xf32>
    %c0_358 = arith.constant 0 : index
    %c0_359 = arith.constant 0 : index
    %478 = vector.load %arg10[%c0_358, %c0_359] : memref<4x23xf32, #tpu.memory_space<vmem>>, vector<1x23xf32>
    tpu.vector_store %arg10[%c0_358, %c0_359], %477 {strides = array<i32>} : memref<4x23xf32, #tpu.memory_space<vmem>>, vector<1x23xf32>,
    return
  }
}

</mosaic_0001>

<llo_original>
// kernel: tile.9
$region0: #{tile.9}
  %s0 = inlined_call_operand.vmem [shape: f32[6,3,23], index: 0, kind: input, shape index: {}]
  %s1 = inlined_call_operand.vmem [shape: f32[6,69], index: 1, kind: output, shape index: {}]
  $region1: #{tile.9} parent=0
    #allocation0 [shape = 'u8[24576]{0}', space=vmem, size = 0x6000, scoped, tag = 'scoped mem for input reshape']
    %s3 = sshllo.u32 0, 4
    %s4 = smul.addr 4, 5
    %s5 = scalar_lea.vmem %s0, %s4
    %v6 = vld [vmem:[%s5] sm:%s3]
    %s7 = scalar_lea.vmem [#allocation0], 40
    %8 = vst [vmem:[%s7] sm:%s3] %v6
    %s9 = smul.addr 4, 4
    %s10 = scalar_lea.vmem %s0, %s9
    %v11 = vld [vmem:[%s10] sm:%s3]
    %s12 = scalar_lea.vmem [#allocation0], 32
    %13 = vst [vmem:[%s12] sm:%s3] %v11
    %s14 = smul.addr 4, 3
    %s15 = scalar_lea.vmem %s0, %s14
    %v16 = vld [vmem:[%s15] sm:%s3]
    %s17 = scalar_lea.vmem [#allocation0], 24
    %18 = vst [vmem:[%s17] sm:%s3] %v16
    %s19 = smul.addr 4, 2
    %s20 = scalar_lea.vmem %s0, %s19
    %v21 = vld [vmem:[%s20] sm:%s3]
    %s22 = scalar_lea.vmem [#allocation0], 16
    %23 = vst [vmem:[%s22] sm:%s3] %v21
    %s24 = scalar_lea.vmem %s0, 4
    %v25 = vld [vmem:[%s24] sm:%s3]
    %s26 = scalar_lea.vmem [#allocation0], 8
    %27 = vst [vmem:[%s26] sm:%s3] %v25
    %v28 = vld [vmem:[%s0] sm:%s3]
    %29 = vst [vmem:[#allocation0] sm:%s3] %v28
    %v30 = vld [vmem:[#allocation0] ss:$8 sm:$0xf]
    %s31 = smov 48
    %v32 = vld [vmem:[#allocation0] ss:$8 sm:%s31]
    %vm33 = vcmask 1045508
    %v34 = vsel %vm33, %v32, %v30
    %vm35 = vcmask 187392
    %36 = vst.msk [vmem:[%s1] sm:$0x3f] %vm35, %v34
    %s37 = scalar_lea.vmem [#allocation0], 2
    %v38 = vld [vmem:[%s37] ss:$8 sm:$0xf]
    %s39 = scalar_lea.vmem [#allocation0], 2
    %s40 = smov 48
    %v41 = vld [vmem:[%s39] ss:$8 sm:%s40]
    %vm42 = vcmask 1045508
    %v43 = vsel %vm42, %v41, %v38
    %44 = vrot.lane.b32.xlu0 %v43, 46
    %v45 = vpop.permute.xlu0 %44
    %vm46 = vcmask 564592
    %47 = vst.msk [vmem:[%s1] sm:$0x3f] %vm46, %v45
    %s48 = scalar_lea.vmem [#allocation0], 1
    %v49 = vld [vmem:[%s48] ss:$8 sm:$0xf]
    %s50 = scalar_lea.vmem [#allocation0], 1
    %s51 = smov 48
    %v52 = vld [vmem:[%s50] ss:$8 sm:%s51]
    %vm53 = vcmask 1045508
    %v54 = vsel %vm53, %v52, %v49
    %55 = vrot.lane.b32.xlu0 %v54, 23
    %v56 = vpop.permute.xlu0 %55
    %vm57 = vcmask 375992
    %58 = vst.msk [vmem:[%s1] sm:$0x3f] %vm57, %v56

// kernel: actor_forward.1
$region0: #{actor_forward.1}
  #allocation0 [shape = 'u32[]', space=smem, size = 0x4, offset = 0x4, fixed_abs, tag = 'smem constant byte address 0x4 - core index']
  #allocation1 [shape = 'u32[144,128]{1,0:T(1,128)}', space=vmem, size = 0x12000, scoped, tag = 'internal scratch']
  #allocation2 [shape = 'f32[1,69]{1,0:T(1,128)}', space=vmem, size = 0x200, scoped, tag = 'scratch operand']
  %s0 = inlined_call_operand.vmem [shape: f32[6,69], index: 0, kind: input, shape index: {}]
  %s1 = inlined_call_operand.hbm [shape: f32[7,8,8,69], index: 1, kind: input, shape index: {}]
  %s2 = inlined_call_operand.hbm [shape: f32[7,8,69], index: 2, kind: input, shape index: {}]
  %s3 = inlined_call_operand.hbm [shape: f32[7,8,69], index: 3, kind: input, shape index: {}]
  %s4 = inlined_call_operand.vmem [shape: f32[69,69], index: 4, kind: input, shape index: {}]
  %s5 = inlined_call_operand.hbm [shape: f32[3,69], index: 5, kind: input, shape index: {}]
  %s6 = inlined_call_operand.hbm [shape: f32[7,8,8,23], index: 6, kind: input, shape index: {}]
  %s7 = inlined_call_operand.hbm [shape: f32[7,8,23], index: 7, kind: input, shape index: {}]
  %s8 = inlined_call_operand.hbm [shape: f32[7,8,23], index: 8, kind: input, shape index: {}]
  %s9 = inlined_call_operand.vmem [shape: f32[23,23], index: 9, kind: input, shape index: {}]
  %s10 = inlined_call_operand.vmem [shape: f32[4,23], index: 10, kind: output, shape index: {}]
  %s11 = sld [smem:[#allocation0]]
  $region78: #{actor_forward.1} parent=0
    _
  %s13 = ssub.s32 1, %s11
  %s14 = scalar_select 0, %s13, %s11
  $region1: #{actor_forward.1} parent=0
    #allocation3 [shape = 'u8[229376]{0}', space=vmem, size = 0x38000, scoped, tag = 'input window, operand 1, single buffered']
    #allocation4 [shape = 's32[1]{0}', space=sflag, size = 0x4, scoped, tag = 'scoped memory for actor_forward.1']
    #allocation5 [shape = 'u8[28672]{0}', space=vmem, size = 0x7000, scoped, tag = 'input window, operand 2, single buffered']
    #allocation6 [shape = 's32[1]{0}', space=sflag, size = 0x4, scoped, tag = 'scoped memory for actor_forward.1']
    #allocation7 [shape = 'u8[28672]{0}', space=vmem, size = 0x7000, scoped, tag = 'input window, operand 3, single buffered']
    #allocation8 [shape = 'u8[2048]{0}', space=vmem, size = 0x800, scoped, tag = 'input window, operand 5, single buffered']
    #allocation9 [shape = 's32[1]{0}', space=sflag, size = 0x4, scoped, tag = 'scoped memory for actor_forward.1']
    #allocation10 [shape = 'u8[229376]{0}', space=vmem, size = 0x38000, scoped, tag = 'input window, operand 6, single buffered']
    #allocation11 [shape = 'u8[28672]{0}', space=vmem, size = 0x7000, scoped, tag = 'input window, operand 7, single buffered']
    #allocation12 [shape = 's32[1]{0}', space=sflag, size = 0x4, scoped, tag = 'scoped memory for actor_forward.1']
    #allocation13 [shape = 'u8[28672]{0}', space=vmem, size = 0x7000, scoped, tag = 'input window, operand 8, single buffered']
    %15 = vsyncpa [#allocation4], 0
    %16 = vsyncpa [#allocation6], 0
    %17 = vsyncpa [#allocation9], 0
    %18 = vsyncpa [#allocation12], 0
    // Predicated region
    $region2: #{actor_forward.1} parent=1 // pred_check
      _
    $region3: #{actor_forward.1} parent=1 // pred_check_branch
      %20 = sbr.rel (0) target = $region5
    $region4: #{actor_forward.1} parent=1 // pred_region
      _
    $region5: #{actor_forward.1} parent=1 // pred_fallthru
      _
    // Predicated region
    $region6: #{actor_forward.1} parent=1 // pred_check
      _
    $region7: #{actor_forward.1} parent=1 // pred_check_branch
      %22 = sbr.rel (0) target = $region9
    $region8: #{actor_forward.1} parent=1 // pred_region
      %s24 = ssub.s32 7168, 7168
      %25 = vsyncadd [#allocation4], %s24
      %s26 = sshll.u32 [#allocation3], 4
      %s27 = int_to_ptr.vmem [resolvable:$true] %s26
      %32 = dma.hbm_to_vmem [thread:$0]  %s1, 7168, %s27, [#allocation4], 128, 128, 8
    $region9: #{actor_forward.1} parent=1 // pred_fallthru
      _
    // Predicated region
    $region10: #{actor_forward.1} parent=1 // pred_check
      _
    $region11: #{actor_forward.1} parent=1 // pred_check_branch
      %34 = sbr.rel (0) target = $region13
    $region12: #{actor_forward.1} parent=1 // pred_region
      %s36 = ssub.s32 896, 896
      %37 = vsyncadd [#allocation6], %s36
      %s38 = sshll.u32 [#allocation5], 4
      %s39 = int_to_ptr.vmem [resolvable:$true] %s38
      %44 = dma.hbm_to_vmem [thread:$0]  %s2, 896, %s39, [#allocation6], 128, 128, 8
    $region13: #{actor_forward.1} parent=1 // pred_fallthru
      _
    // Predicated region
    $region14: #{actor_forward.1} parent=1 // pred_check
      _
    $region15: #{actor_forward.1} parent=1 // pred_check_branch
      %46 = sbr.rel (0) target = $region17
    $region16: #{actor_forward.1} parent=1 // pred_region
      %s48 = ssub.s32 896, 896
      %49 = vsyncadd [#allocation6], %s48
      %s50 = sshll.u32 [#allocation7], 4
      %s51 = int_to_ptr.vmem [resolvable:$true] %s50
      %56 = dma.hbm_to_vmem [thread:$0]  %s3, 896, %s51, [#allocation6], 128, 128, 8
    $region17: #{actor_forward.1} parent=1 // pred_fallthru
      _
    // Predicated region
    $region18: #{actor_forward.1} parent=1 // pred_check
      _
    $region19: #{actor_forward.1} parent=1 // pred_check_branch
      %58 = sbr.rel (0) target = $region21
    $region20: #{actor_forward.1} parent=1 // pred_region
      _
    $region21: #{actor_forward.1} parent=1 // pred_fallthru
      _
    // Predicated region
    $region22: #{actor_forward.1} parent=1 // pred_check
      _
    $region23: #{actor_forward.1} parent=1 // pred_check_branch
      %60 = sbr.rel (0) target = $region25
    $region24: #{actor_forward.1} parent=1 // pred_region
      %s62 = ssub.s32 64, 64
      %63 = vsyncadd [#allocation9], %s62
      %s65 = sshll.u32 [#allocation8], 4
      %s66 = int_to_ptr.vmem [resolvable:$true] %s65
      %68 = dma.hbm_to_vmem [thread:$0]  %s5, 64, %s66, [#allocation9]
    $region25: #{actor_forward.1} parent=1 // pred_fallthru
      _
    // Predicated region
    $region26: #{actor_forward.1} parent=1 // pred_check
      _
    $region27: #{actor_forward.1} parent=1 // pred_check_branch
      %70 = sbr.rel (0) target = $region29
    $region28: #{actor_forward.1} parent=1 // pred_region
      %s72 = ssub.s32 7168, 7168
      %73 = vsyncadd [#allocation9], %s72
      %s74 = sshll.u32 [#allocation10], 4
      %s75 = int_to_ptr.vmem [resolvable:$true] %s74
      %80 = dma.hbm_to_vmem [thread:$0]  %s6, 7168, %s75, [#allocation9], 128, 128, 8
    $region29: #{actor_forward.1} parent=1 // pred_fallthru
      _
    // Predicated region
    $region30: #{actor_forward.1} parent=1 // pred_check
      _
    $region31: #{actor_forward.1} parent=1 // pred_check_branch
      %82 = sbr.rel (0) target = $region33
    $region32: #{actor_forward.1} parent=1 // pred_region
      %s84 = ssub.s32 896, 896
      %85 = vsyncadd [#allocation12], %s84
      %s86 = sshll.u32 [#allocation11], 4
      %s87 = int_to_ptr.vmem [resolvable:$true] %s86
      %92 = dma.hbm_to_vmem [thread:$0]  %s7, 896, %s87, [#allocation12], 128, 128, 8
    $region33: #{actor_forward.1} parent=1 // pred_fallthru
      _
    // Predicated region
    $region34: #{actor_forward.1} parent=1 // pred_check
      _
    $region35: #{actor_forward.1} parent=1 // pred_check_branch
      %94 = sbr.rel (0) target = $region37
    $region36: #{actor_forward.1} parent=1 // pred_region
      %s96 = ssub.s32 896, 896
      %97 = vsyncadd [#allocation12], %s96
      %s98 = sshll.u32 [#allocation13], 4
      %s99 = int_to_ptr.vmem [resolvable:$true] %s98
      %104 = dma.hbm_to_vmem [thread:$0]  %s8, 896, %s99, [#allocation12], 128, 128, 8
    $region37: #{actor_forward.1} parent=1 // pred_fallthru
      _
    // Predicated region
    $region38: #{actor_forward.1} parent=1 // pred_check
      _
    $region39: #{actor_forward.1} parent=1 // pred_check_branch
      %106 = sbr.rel (0) target = $region41
    $region40: #{actor_forward.1} parent=1 // pred_region
      _
    $region41: #{actor_forward.1} parent=1 // pred_fallthru
      _
    // Predicated region
    $region42: #{actor_forward.1} parent=1 // pred_check
      _
    $region43: #{actor_forward.1} parent=1 // pred_check_branch
      %108 = sbr.rel (0) target = $region45
    $region44: #{actor_forward.1} parent=1 // pred_region
      %109 = dma.done [#allocation4], 7168
    $region45: #{actor_forward.1} parent=1 // pred_fallthru
      _
    // Predicated region
    $region46: #{actor_forward.1} parent=1 // pred_check
      _
    $region47: #{actor_forward.1} parent=1 // pred_check_branch
      %111 = sbr.rel (0) target = $region49
    $region48: #{actor_forward.1} parent=1 // pred_region
      %112 = dma.done [#allocation6], 896
    $region49: #{actor_forward.1} parent=1 // pred_fallthru
      _
    // Predicated region
    $region50: #{actor_forward.1} parent=1 // pred_check
      _
    $region51: #{actor_forward.1} parent=1 // pred_check_branch
      %114 = sbr.rel (0) target = $region53
    $region52: #{actor_forward.1} parent=1 // pred_region
      %115 = dma.done [#allocation6], 896
    $region53: #{actor_forward.1} parent=1 // pred_fallthru
      _
    // Predicated region
    $region54: #{actor_forward.1} parent=1 // pred_check
      _
    $region55: #{actor_forward.1} parent=1 // pred_check_branch
      %117 = sbr.rel (0) target = $region57
    $region56: #{actor_forward.1} parent=1 // pred_region
      %118 = dma.done [#allocation9], 64
    $region57: #{actor_forward.1} parent=1 // pred_fallthru
      _
    // Predicated region
    $region58: #{actor_forward.1} parent=1 // pred_check
      _
    $region59: #{actor_forward.1} parent=1 // pred_check_branch
      %120 = sbr.rel (0) target = $region61
    $region60: #{actor_forward.1} parent=1 // pred_region
      %121 = dma.done [#allocation9], 7168
    $region61: #{actor_forward.1} parent=1 // pred_fallthru
      _
    // Predicated region
    $region62: #{actor_forward.1} parent=1 // pred_check
      _
    $region63: #{actor_forward.1} parent=1 // pred_check_branch
      %123 = sbr.rel (0) target = $region65
    $region64: #{actor_forward.1} parent=1 // pred_region
      %124 = dma.done [#allocation12], 896
    $region65: #{actor_forward.1} parent=1 // pred_fallthru
      _
    // Predicated region
    $region66: #{actor_forward.1} parent=1 // pred_check
      _
    $region67: #{actor_forward.1} parent=1 // pred_check_branch
      %126 = sbr.rel (0) target = $region69
    $region68: #{actor_forward.1} parent=1 // pred_region
      %127 = dma.done [#allocation12], 896
    $region69: #{actor_forward.1} parent=1 // pred_fallthru
      _
    %v128 = vld [vmem:[%s0] sm:$0x1]
    %v129 = vld [vmem:[%s0 + $0x1] sm:$0x1]
    %v130 = vld [vmem:[%s0 + $0x2] sm:$0x1]
    %v131 = vld [vmem:[%s0 + $0x3] sm:$0x1]
    %v132 = vld [vmem:[%s0 + $0x4] sm:$0x1]
    %v133 = vld [vmem:[%s0 + $0x5] sm:$0x1]
    %v134 = vld [vmem:[#allocation3] sm:$0xff]
    %v135 = vlaneseq
    %v136 = vshrl.u32 %v135, 7
    %v137 = vsub.s32 0, %v136
    %v138 = vrot.slane %v128, %v137
    %v139 = vmul.f32 %v134, %v138
    %s140 = scalar_lea.vmem [#allocation3], 8
    %v141 = vld [vmem:[%s140] sm:$0xff]
    %v142 = vlaneseq
    %v143 = vshrl.u32 %v142, 7
    %v144 = vsub.s32 0, %v143
    %v145 = vrot.slane %v129, %v144
    %v146 = vmul.f32 %v141, %v145
    %s147 = scalar_lea.vmem [#allocation3], 16
    %v148 = vld [vmem:[%s147] sm:$0xff]
    %v149 = vlaneseq
    %v150 = vshrl.u32 %v149, 7
    %v151 = vsub.s32 0, %v150
    %v152 = vrot.slane %v130, %v151
    %v153 = vmul.f32 %v148, %v152
    %s154 = scalar_lea.vmem [#allocation3], 24
    %v155 = vld [vmem:[%s154] sm:$0xff]
    %v156 = vlaneseq
    %v157 = vshrl.u32 %v156, 7
    %v158 = vsub.s32 0, %v157
    %v159 = vrot.slane %v131, %v158
    %v160 = vmul.f32 %v155, %v159
    %s161 = scalar_lea.vmem [#allocation3], 32
    %v162 = vld [vmem:[%s161] sm:$0xff]
    %v163 = vlaneseq
    %v164 = vshrl.u32 %v163, 7
    %v165 = vsub.s32 0, %v164
    %v166 = vrot.slane %v132, %v165
    %v167 = vmul.f32 %v162, %v166
    %s168 = scalar_lea.vmem [#allocation3], 40
    %v169 = vld [vmem:[%s168] sm:$0xff]
    %v170 = vlaneseq
    %v171 = vshrl.u32 %v170, 7
    %v172 = vsub.s32 0, %v171
    %v173 = vrot.slane %v133, %v172
    %v174 = vmul.f32 %v169, %v173
    %v175 = vadd.f32 %v139, %v146
    %v176 = vadd.f32 %v153, %v160
    %v177 = vadd.f32 %v167, %v174
    %v178 = vadd.f32 %v175, %v176
    %v179 = vadd.f32 %v178, %v177
    %v180 = vld [vmem:[#allocation5] sm:$0xff]
    %v181 = vadd.f32 %v179, %v180
    %vm182 = vcmp.gt.f32.partialorder %v181, 0.0
    %v183 = vmul.f32 %v181, 0.01
    %v184 = vsel %vm182, %v181, %v183
    %v185 = vld [vmem:[#allocation7] sm:$0xff]
    %v186 = vmul.f32 %v184, %v185
    %s187 = scalar_lea.vmem [#allocation3], 64
    %v188 = vld [vmem:[%s187] sm:$0xff]
    %v189 = vlaneseq
    %v190 = vshrl.u32 %v189, 7
    %v191 = vsub.s32 0, %v190
    %v192 = vrot.slane %v186, %v191
    %v193 = vmul.f32 %v188, %v192
    %s194 = scalar_lea.vmem [#allocation3], 72
    %v195 = vld [vmem:[%s194] sm:$0xff]
    %v196 = vlaneseq
    %v197 = vshrl.u32 %v196, 7
    %v198 = vsub.s32 1, %v197
    %v199 = vrot.slane %v186, %v198
    %v200 = vmul.f32 %v195, %v199
    %s201 = scalar_lea.vmem [#allocation3], 80
    %v202 = vld [vmem:[%s201] sm:$0xff]
    %v203 = vlaneseq
    %v204 = vshrl.u32 %v203, 7
    %v205 = vsub.s32 2, %v204
    %v206 = vrot.slane %v186, %v205
    %v207 = vmul.f32 %v202, %v206
    %s208 = scalar_lea.vmem [#allocation3], 88
    %v209 = vld [vmem:[%s208] sm:$0xff]
    %v210 = vlaneseq
    %v211 = vshrl.u32 %v210, 7
    %v212 = vsub.s32 3, %v211
    %v213 = vrot.slane %v186, %v212
    %v214 = vmul.f32 %v209, %v213
    %v215 = vadd.f32 %v193, %v200
    %v216 = vadd.f32 %v207, %v214
    %v217 = vadd.f32 %v215, %v216
    %s218 = scalar_lea.vmem [#allocation5], 8
    %v219 = vld [vmem:[%s218] sm:$0xff]
    %v220 = vadd.f32 %v217, %v219
    %vm221 = vcmp.gt.f32.partialorder %v220, 0.0
    %v222 = vmul.f32 %v220, 0.01
    %v223 = vsel %vm221, %v220, %v222
    %s224 = scalar_lea.vmem [#allocation7], 8
    %v225 = vld [vmem:[%s224] sm:$0xff]
    %v226 = vmul.f32 %v223, %v225
    %s227 = scalar_lea.vmem [#allocation3], 128
    %v228 = vld [vmem:[%s227] sm:$0xff]
    %v229 = vlaneseq
    %v230 = vshrl.u32 %v229, 7
    %v231 = vsub.s32 0, %v230
    %v232 = vrot.slane %v226, %v231
    %v233 = vmul.f32 %v228, %v232
    %s234 = scalar_lea.vmem [#allocation3], 136
    %v235 = vld [vmem:[%s234] sm:$0xff]
    %v236 = vlaneseq
    %v237 = vshrl.u32 %v236, 7
    %v238 = vsub.s32 1, %v237
    %v239 = vrot.slane %v226, %v238
    %v240 = vmul.f32 %v235, %v239
    %s241 = scalar_lea.vmem [#allocation3], 144
    %v242 = vld [vmem:[%s241] sm:$0xff]
    %v243 = vlaneseq
    %v244 = vshrl.u32 %v243, 7
    %v245 = vsub.s32 2, %v244
    %v246 = vrot.slane %v226, %v245
    %v247 = vmul.f32 %v242, %v246
    %s248 = scalar_lea.vmem [#allocation3], 152
    %v249 = vld [vmem:[%s248] sm:$0xff]
    %v250 = vlaneseq
    %v251 = vshrl.u32 %v250, 7
    %v252 = vsub.s32 3, %v251
    %v253 = vrot.slane %v226, %v252
    %v254 = vmul.f32 %v249, %v253
    %v255 = vadd.f32 %v233, %v240
    %v256 = vadd.f32 %v247, %v254
    %v257 = vadd.f32 %v255, %v256
    %s258 = scalar_lea.vmem [#allocation5], 16
    %v259 = vld [vmem:[%s258] sm:$0xff]
    %v260 = vadd.f32 %v257, %v259
    %vm261 = vcmp.gt.f32.partialorder %v260, 0.0
    %v262 = vmul.f32 %v260, 0.01
    %v263 = vsel %vm261, %v260, %v262
    %s264 = scalar_lea.vmem [#allocation7], 16
    %v265 = vld [vmem:[%s264] sm:$0xff]
    %v266 = vmul.f32 %v263, %v265
    %s267 = scalar_lea.vmem [#allocation3], 192
    %v268 = vld [vmem:[%s267] sm:$0xff]
    %v269 = vlaneseq
    %v270 = vshrl.u32 %v269, 7
    %v271 = vsub.s32 0, %v270
    %v272 = vrot.slane %v266, %v271
    %v273 = vmul.f32 %v268, %v272
    %s274 = scalar_lea.vmem [#allocation3], 200
    %v275 = vld [vmem:[%s274] sm:$0xff]
    %v276 = vlaneseq
    %v277 = vshrl.u32 %v276, 7
    %v278 = vsub.s32 1, %v277
    %v279 = vrot.slane %v266, %v278
    %v280 = vmul.f32 %v275, %v279
    %s281 = scalar_lea.vmem [#allocation3], 208
    %v282 = vld [vmem:[%s281] sm:$0xff]
    %v283 = vlaneseq
    %v284 = vshrl.u32 %v283, 7
    %v285 = vsub.s32 2, %v284
    %v286 = vrot.slane %v266, %v285
    %v287 = vmul.f32 %v282, %v286
    %s288 = scalar_lea.vmem [#allocation3], 216
    %v289 = vld [vmem:[%s288] sm:$0xff]
    %v290 = vlaneseq
    %v291 = vshrl.u32 %v290, 7
    %v292 = vsub.s32 3, %v291
    %v293 = vrot.slane %v266, %v292
    %v294 = vmul.f32 %v289, %v293
    %v295 = vadd.f32 %v273, %v280
    %v296 = vadd.f32 %v287, %v294
    %v297 = vadd.f32 %v295, %v296
    %v298 = vld [vmem:[%s4] sm:$0xff]
    %v299 = vld [vmem:[%s4 + $0x8] sm:$0xff]
    %v300 = vld [vmem:[%s4 + $0x10] sm:$0xff]
    %v301 = vld [vmem:[%s4 + $0x18] sm:$0xff]
    %v302 = vld [vmem:[%s4 + $0x20] sm:$0xff]
    %v303 = vld [vmem:[%s4 + $0x28] sm:$0xff]
    %v304 = vld [vmem:[%s4 + $0x30] sm:$0xff]
    %v305 = vld [vmem:[%s4 + $0x38] sm:$0xff]
    %v306 = vld [vmem:[%s4 + $0x40] sm:$0x1f]
    %s307 = scalar_lea.vmem [#allocation5], 24
    %v308 = vld [vmem:[%s307] sm:$0xff]
    %vm309 = vcmask 564224
    %v311 = vsel %vm309, %v297, 0
    %vm313 = vcmask 1044480
    %v315 = vsel %vm313, %v306, 0
    %317 = vmatprep.subr.mxu0 0.0
    %318 = vmatpush1.msra.mxu0 %v298
    %319 = vmatprep.subr.mxu0 0.0
    %320 = vmatpush1.msra.mxu0 %v299
    %321 = vmatprep.subr.mxu0 0.0
    %322 = vmatpush1.msra.mxu0 %v300
    %323 = vmatprep.subr.mxu0 0.0
    %324 = vmatpush1.msra.mxu0 %v301
    %325 = vmatprep.subr.mxu0 0.0
    %326 = vmatpush1.msra.mxu0 %v302
    %327 = vmatprep.subr.mxu0 0.0
    %328 = vmatpush1.msra.mxu0 %v303
    %329 = vmatprep.subr.mxu0 0.0
    %330 = vmatpush1.msra.mxu0 %v304
    %331 = vmatprep.subr.mxu0 0.0
    %332 = vmatpush1.msra.mxu0 %v305
    %333 = vmatprep.subr.mxu0 0.0
    %334 = vmatpush1.msra.mxu0 %v315
    %335 = vmatprep.subr.mxu0 0.0
    %336 = vmatpush1.msra.mxu0 0.0
    %337 = vmatprep.subr.mxu0 0.0
    %338 = vmatpush1.msra.mxu0 0.0
    %339 = vmatprep.subr.mxu0 0.0
    %340 = vmatpush1.msra.mxu0 0.0
    %341 = vmatprep.subr.mxu0 0.0
    %342 = vmatpush1.msra.mxu0 0.0
    %343 = vmatprep.subr.mxu0 0.0
    %344 = vmatpush1.msra.mxu0 0.0
    %345 = vmatprep.subr.mxu0 0.0
    %346 = vmatpush1.msra.mxu0 0.0
    %347 = vmatprep.subr.mxu0 0.0
    %348 = vmatpush1.msra.mxu0 0.0
    %349 = vmatprep.subr.mxu0 0.0
    %350 = vmatpush1.msra.mxu0 0.0
    %351 = vmatprep.subr.mxu0 0.0
    %352 = vmatpush1.msra.mxu0 0.0
    %353 = vmatprep.subr.mxu0 0.0
    %354 = vmatpush1.msra.mxu0 0.0
    %355 = vmatprep.subr.mxu0 0.0
    %356 = vmatpush1.msra.mxu0 0.0
    %357 = vmatprep.subr.mxu0 0.0
    %358 = vmatpush1.msra.mxu0 0.0
    %359 = vmatprep.subr.mxu0 0.0
    %360 = vmatpush1.msra.mxu0 0.0
    %361 = vmatprep.subr.mxu0 0.0
    %362 = vmatpush1.msra.mxu0 0.0
    %363 = vmatprep.subr.mxu0 0.0
    %364 = vmatpush1.msra.mxu0 0.0
    %365 = vmatprep.subr.mxu0 0.0
    %366 = vmatpush1.msra.mxu0 0.0
    %367 = vmatprep.subr.mxu0 0.0
    %368 = vmatpush1.msra.mxu0 0.0
    %369 = vmatprep.subr.mxu0 0.0
    %370 = vmatpush1.msra.mxu0 0.0
    %371 = vmatprep.subr.mxu0 0.0
    %372 = vmatpush1.msra.mxu0 0.0
    %373 = vmatprep.subr.mxu0 0.0
    %374 = vmatpush1.msra.mxu0 0.0
    %375 = vmatprep.subr.mxu0 0.0
    %376 = vmatpush1.msra.mxu0 0.0
    %377 = vmatprep.subr.mxu0 0.0
    %378 = vmatpush1.msra.mxu0 0.0
    %379 = vmatprep.subr.mxu0 0.0
    %380 = vmatpush1.msra.mxu0 0.0
    %381 = vmatprep.mubr.f32.mxu0 0.0
    %382 = vmatmul.mubr.f32.gmra.mrb[0].mxu0 %v311
    %v383 = vpop.f32.mrb[0].mxu0
    %v384 = vadd.f32 %v308, %v383
    %v385 = vpop.f32.mrb[0].mxu0
    %386 = vdwg.mxu0
    %vm387 = vcmp.gt.f32.partialorder %v384, 0.0
    %v388 = vmul.f32 %v384, 0.01
    %v389 = vsel %vm387, %v384, %v388
    %s390 = scalar_lea.vmem [#allocation7], 24
    %v391 = vld [vmem:[%s390] sm:$0xff]
    %v392 = vmul.f32 %v389, %v391
    %s393 = scalar_lea.vmem [#allocation3], 256
    %v394 = vld [vmem:[%s393] sm:$0xff]
    %v395 = vlaneseq
    %v396 = vshrl.u32 %v395, 7
    %v397 = vsub.s32 0, %v396
    %v398 = vrot.slane %v392, %v397
    %v399 = vmul.f32 %v394, %v398
    %s400 = scalar_lea.vmem [#allocation3], 264
    %v401 = vld [vmem:[%s400] sm:$0xff]
    %v402 = vlaneseq
    %v403 = vshrl.u32 %v402, 7
    %v404 = vsub.s32 1, %v403
    %v405 = vrot.slane %v392, %v404
    %v406 = vmul.f32 %v401, %v405
    %s407 = scalar_lea.vmem [#allocation3], 272
    %v408 = vld [vmem:[%s407] sm:$0xff]
    %v409 = vlaneseq
    %v410 = vshrl.u32 %v409, 7
    %v411 = vsub.s32 2, %v410
    %v412 = vrot.slane %v392, %v411
    %v413 = vmul.f32 %v408, %v412
    %s414 = scalar_lea.vmem [#allocation3], 280
    %v415 = vld [vmem:[%s414] sm:$0xff]
    %v416 = vlaneseq
    %v417 = vshrl.u32 %v416, 7
    %v418 = vsub.s32 3, %v417
    %v419 = vrot.slane %v392, %v418
    %v420 = vmul.f32 %v415, %v419
    %v421 = vadd.f32 %v399, %v406
    %v422 = vadd.f32 %v413, %v420
    %v423 = vadd.f32 %v421, %v422
    %s424 = scalar_lea.vmem [#allocation5], 32
    %v425 = vld [vmem:[%s424] sm:$0xff]
    %v426 = vadd.f32 %v423, %v425
    %vm427 = vcmp.gt.f32.partialorder %v426, 0.0
    %v428 = vmul.f32 %v426, 0.01
    %v429 = vsel %vm427, %v426, %v428
    %s430 = scalar_lea.vmem [#allocation7], 32
    %v431 = vld [vmem:[%s430] sm:$0xff]
    %v432 = vmul.f32 %v429, %v431
    %s433 = scalar_lea.vmem [#allocation3], 320
    %v434 = vld [vmem:[%s433] sm:$0xff]
    %v435 = vlaneseq
    %v436 = vshrl.u32 %v435, 7
    %v437 = vsub.s32 0, %v436
    %v438 = vrot.slane %v432, %v437
    %v439 = vmul.f32 %v434, %v438
    %s440 = scalar_lea.vmem [#allocation3], 328
    %v441 = vld [vmem:[%s440] sm:$0xff]
    %v442 = vlaneseq
    %v443 = vshrl.u32 %v442, 7
    %v444 = vsub.s32 1, %v443
    %v445 = vrot.slane %v432, %v444
    %v446 = vmul.f32 %v441, %v445
    %s447 = scalar_lea.vmem [#allocation3], 336
    %v448 = vld [vmem:[%s447] sm:$0xff]
    %v449 = vlaneseq
    %v450 = vshrl.u32 %v449, 7
    %v451 = vsub.s32 2, %v450
    %v452 = vrot.slane %v432, %v451
    %v453 = vmul.f32 %v448, %v452
    %s454 = scalar_lea.vmem [#allocation3], 344
    %v455 = vld [vmem:[%s454] sm:$0xff]
    %v456 = vlaneseq
    %v457 = vshrl.u32 %v456, 7
    %v458 = vsub.s32 3, %v457
    %v459 = vrot.slane %v432, %v458
    %v460 = vmul.f32 %v455, %v459
    %v461 = vadd.f32 %v439, %v446
    %v462 = vadd.f32 %v453, %v460
    %v463 = vadd.f32 %v461, %v462
    %s464 = scalar_lea.vmem [#allocation5], 40
    %v465 = vld [vmem:[%s464] sm:$0xff]
    %v466 = vadd.f32 %v463, %v465
    %vm467 = vcmp.gt.f32.partialorder %v466, 0.0
    %v468 = vmul.f32 %v466, 0.01
    %v469 = vsel %vm467, %v466, %v468
    %s470 = scalar_lea.vmem [#allocation7], 40
    %v471 = vld [vmem:[%s470] sm:$0xff]
    %v472 = vmul.f32 %v469, %v471
    %s473 = scalar_lea.vmem [#allocation3], 384
    %v474 = vld [vmem:[%s473] sm:$0xff]
    %v475 = vlaneseq
    %v476 = vshrl.u32 %v475, 7
    %v477 = vsub.s32 0, %v476
    %v478 = vrot.slane %v472, %v477
    %v479 = vmul.f32 %v474, %v478
    %s480 = scalar_lea.vmem [#allocation3], 392
    %v481 = vld [vmem:[%s480] sm:$0xff]
    %v482 = vlaneseq
    %v483 = vshrl.u32 %v482, 7
    %v484 = vsub.s32 1, %v483
    %v485 = vrot.slane %v472, %v484
    %v486 = vmul.f32 %v481, %v485
    %v487 = vadd.f32 %v479, %v486
    %s488 = scalar_lea.vmem [#allocation5], 48
    %v489 = vld [vmem:[%s488] sm:$0xff]
    %v490 = vadd.f32 %v487, %v489
    %s491 = scalar_lea.vmem [#allocation7], 48
    %v492 = vld [vmem:[%s491] sm:$0xff]
    %v493 = vmul.f32 %v490, %v492
    %v494 = vand.u32 2147483647, %v493
    %v495 = vld [vmem:[#allocation8] sm:$0x1]
    %v496 = vld [vmem:[#allocation8 + $0x1] sm:$0x1]
    %v497 = vld [vmem:[#allocation8 + $0x2] sm:$0x1]
    %vm498 = vcmp.lt.f32.partialorder %v494, %v495
    %v499 = vmul.f32 %v494, 0.01
    %v500 = vadd.f32 %v499, %v496
    %v501 = vsel %vm498, %v494, %v500
    %v502 = vmul.f32 %v501, %v497
    %vm503 = vcmask 557056
    %504 = vst.msk [vmem:[#allocation2] sm:$0x1] %vm503, %v502
    %v505 = vld [vmem:[#allocation2] sm:$0x1]
    %v507 = vlaneseq
    %v508 = vshrl.u32 %v507, 7
    %v509 = vsub.s32 0, %v508
    %v510 = vrot.slane %v505, %v509
    %511 = vrot.lane.b32.xlu0 %v510, 105
    %v512 = vpop.permute.xlu0 %511
    %vm514 = vcmask 180224
    %515 = vst.msk [vmem:[%s10 + $0x1] sm:$0x1] %vm514, %v512
    %v516 = vld [vmem:[#allocation2] sm:$0x1]
    %v518 = vlaneseq
    %v519 = vshrl.u32 %v518, 7
    %v520 = vsub.s32 0, %v519
    %v521 = vrot.slane %v516, %v520
    %522 = vrot.lane.b32.xlu0 %v521, 82
    %v523 = vpop.permute.xlu0 %522
    %525 = vst.msk [vmem:[%s10 + $0x2] sm:$0x1] %vm514, %v523
    %v526 = vld [vmem:[#allocation2] sm:$0x1]
    %527 = vst.msk [vmem:[%s10 + $0x3] sm:$0x1] %vm514, %v526
    %v528 = vld [vmem:[#allocation2] sm:$0x1]
    %v529 = vld [vmem:[#allocation10] sm:$0xff]
    %v531 = vlaneseq
    %v532 = vshrl.u32 %v531, 7
    %v533 = vsub.s32 0, %v532
    %v534 = vrot.slane %v528, %v533
    %v536 = vmul.f32 %v529, %v534
    %s537 = scalar_lea.vmem [#allocation10], 8
    %v538 = vld [vmem:[%s537] sm:$0xff]
    %539 = vrot.lane.b32.xlu0 %v534, 105
    %v540 = vpop.permute.xlu0 %539
    %v542 = vmul.f32 %v538, %v540
    %s543 = scalar_lea.vmem [#allocation10], 16
    %v544 = vld [vmem:[%s543] sm:$0xff]
    %545 = vrot.lane.b32.xlu0 %v534, 82
    %v546 = vpop.permute.xlu0 %545
    %v548 = vmul.f32 %v544, %v546
    %v549 = vadd.f32 %v536, %v542
    %v550 = vadd.f32 %v549, %v548
    %v551 = vld [vmem:[#allocation11] sm:$0xff]
    %v552 = vadd.f32 %v550, %v551
    %vm553 = vcmp.gt.f32.partialorder %v552, 0.0
    %v554 = vmul.f32 %v552, 0.01
    %v555 = vsel %vm553, %v552, %v554
    %v556 = vld [vmem:[#allocation13] sm:$0xff]
    %v557 = vmul.f32 %v555, %v556
    %s558 = scalar_lea.vmem [#allocation10], 64
    %v559 = vld [vmem:[%s558] sm:$0xff]
    %v560 = vlaneseq
    %v561 = vshrl.u32 %v560, 7
    %v562 = vsub.s32 0, %v561
    %v563 = vrot.slane %v557, %v562
    %v564 = vmul.f32 %v559, %v563
    %s565 = scalar_lea.vmem [#allocation10], 72
    %v566 = vld [vmem:[%s565] sm:$0xff]
    %v567 = vlaneseq
    %v568 = vshrl.u32 %v567, 7
    %v569 = vsub.s32 1, %v568
    %v570 = vrot.slane %v557, %v569
    %v571 = vmul.f32 %v566, %v570
    %s572 = scalar_lea.vmem [#allocation10], 80
    %v573 = vld [vmem:[%s572] sm:$0xff]
    %v574 = vlaneseq
    %v575 = vshrl.u32 %v574, 7
    %v576 = vsub.s32 2, %v575
    %v577 = vrot.slane %v557, %v576
    %v578 = vmul.f32 %v573, %v577
    %s579 = scalar_lea.vmem [#allocation10], 88
    %v580 = vld [vmem:[%s579] sm:$0xff]
    %v581 = vlaneseq
    %v582 = vshrl.u32 %v581, 7
    %v583 = vsub.s32 3, %v582
    %v584 = vrot.slane %v557, %v583
    %v585 = vmul.f32 %v580, %v584
    %v586 = vadd.f32 %v564, %v571
    %v587 = vadd.f32 %v578, %v585
    %v588 = vadd.f32 %v586, %v587
    %s589 = scalar_lea.vmem [#allocation11], 8
    %v590 = vld [vmem:[%s589] sm:$0xff]
    %v591 = vadd.f32 %v588, %v590
    %vm592 = vcmp.gt.f32.partialorder %v591, 0.0
    %v593 = vmul.f32 %v591, 0.01
    %v594 = vsel %vm592, %v591, %v593
    %s595 = scalar_lea.vmem [#allocation13], 8
    %v596 = vld [vmem:[%s595] sm:$0xff]
    %v597 = vmul.f32 %v594, %v596
    %s598 = scalar_lea.vmem [#allocation10], 128
    %v599 = vld [vmem:[%s598] sm:$0xff]
    %v600 = vlaneseq
    %v601 = vshrl.u32 %v600, 7
    %v602 = vsub.s32 0, %v601
    %v603 = vrot.slane %v597, %v602
    %v604 = vmul.f32 %v599, %v603
    %s605 = scalar_lea.vmem [#allocation10], 136
    %v606 = vld [vmem:[%s605] sm:$0xff]
    %v607 = vlaneseq
    %v608 = vshrl.u32 %v607, 7
    %v609 = vsub.s32 1, %v608
    %v610 = vrot.slane %v597, %v609
    %v611 = vmul.f32 %v606, %v610
    %s612 = scalar_lea.vmem [#allocation10], 144
    %v613 = vld [vmem:[%s612] sm:$0xff]
    %v614 = vlaneseq
    %v615 = vshrl.u32 %v614, 7
    %v616 = vsub.s32 2, %v615
    %v617 = vrot.slane %v597, %v616
    %v618 = vmul.f32 %v613, %v617
    %s619 = scalar_lea.vmem [#allocation10], 152
    %v620 = vld [vmem:[%s619] sm:$0xff]
    %v621 = vlaneseq
    %v622 = vshrl.u32 %v621, 7
    %v623 = vsub.s32 3, %v622
    %v624 = vrot.slane %v597, %v623
    %v625 = vmul.f32 %v620, %v624
    %v626 = vadd.f32 %v604, %v611
    %v627 = vadd.f32 %v618, %v625
    %v628 = vadd.f32 %v626, %v627
    %s629 = scalar_lea.vmem [#allocation11], 16
    %v630 = vld [vmem:[%s629] sm:$0xff]
    %v631 = vadd.f32 %v628, %v630
    %vm632 = vcmp.gt.f32.partialorder %v631, 0.0
    %v633 = vmul.f32 %v631, 0.01
    %v634 = vsel %vm632, %v631, %v633
    %s635 = scalar_lea.vmem [#allocation13], 16
    %v636 = vld [vmem:[%s635] sm:$0xff]
    %v637 = vmul.f32 %v634, %v636
    %s638 = scalar_lea.vmem [#allocation10], 192
    %v639 = vld [vmem:[%s638] sm:$0xff]
    %v640 = vlaneseq
    %v641 = vshrl.u32 %v640, 7
    %v642 = vsub.s32 0, %v641
    %v643 = vrot.slane %v637, %v642
    %v644 = vmul.f32 %v639, %v643
    %s645 = scalar_lea.vmem [#allocation10], 200
    %v646 = vld [vmem:[%s645] sm:$0xff]
    %v647 = vlaneseq
    %v648 = vshrl.u32 %v647, 7
    %v649 = vsub.s32 1, %v648
    %v650 = vrot.slane %v637, %v649
    %v651 = vmul.f32 %v646, %v650
    %s652 = scalar_lea.vmem [#allocation10], 208
    %v653 = vld [vmem:[%s652] sm:$0xff]
    %v654 = vlaneseq
    %v655 = vshrl.u32 %v654, 7
    %v656 = vsub.s32 2, %v655
    %v657 = vrot.slane %v637, %v656
    %v658 = vmul.f32 %v653, %v657
    %s659 = scalar_lea.vmem [#allocation10], 216
    %v660 = vld [vmem:[%s659] sm:$0xff]
    %v661 = vlaneseq
    %v662 = vshrl.u32 %v661, 7
    %v663 = vsub.s32 3, %v662
    %v664 = vrot.slane %v637, %v663
    %v665 = vmul.f32 %v660, %v664
    %v666 = vadd.f32 %v644, %v651
    %v667 = vadd.f32 %v658, %v665
    %v668 = vadd.f32 %v666, %v667
    %v669 = vld [vmem:[%s9] sm:$0xff]
    %v670 = vld [vmem:[%s9 + $0x8] sm:$0xff]
    %v671 = vld [vmem:[%s9 + $0x10] sm:$0x7f]
    %s672 = scalar_lea.vmem [#allocation11], 24
    %v673 = vld [vmem:[%s672] sm:$0xff]
    %vm674 = vcmask 187392
    %v676 = vsel %vm674, %v668, 0
    %vm678 = vcmask 1046528
    %v680 = vsel %vm678, %v671, 0
    %682 = vmatprep.subr.mxu0 0.0
    %683 = vmatpush1.msra.mxu0 %v669
    %684 = vmatprep.subr.mxu0 0.0
    %685 = vmatpush1.msra.mxu0 %v670
    %686 = vmatprep.subr.mxu0 0.0
    %687 = vmatpush1.msra.mxu0 %v680
    %688 = vmatprep.subr.mxu0 0.0
    %689 = vmatpush1.msra.mxu0 0.0
    %690 = vmatprep.subr.mxu0 0.0
    %691 = vmatpush1.msra.mxu0 0.0
    %692 = vmatprep.subr.mxu0 0.0
    %693 = vmatpush1.msra.mxu0 0.0
    %694 = vmatprep.subr.mxu0 0.0
    %695 = vmatpush1.msra.mxu0 0.0
    %696 = vmatprep.subr.mxu0 0.0
    %697 = vmatpush1.msra.mxu0 0.0
    %698 = vmatprep.subr.mxu0 0.0
    %699 = vmatpush1.msra.mxu0 0.0
    %700 = vmatprep.subr.mxu0 0.0
    %701 = vmatpush1.msra.mxu0 0.0
    %702 = vmatprep.subr.mxu0 0.0
    %703 = vmatpush1.msra.mxu0 0.0
    %704 = vmatprep.subr.mxu0 0.0
    %705 = vmatpush1.msra.mxu0 0.0
    %706 = vmatprep.subr.mxu0 0.0
    %707 = vmatpush1.msra.mxu0 0.0
    %708 = vmatprep.subr.mxu0 0.0
    %709 = vmatpush1.msra.mxu0 0.0
    %710 = vmatprep.subr.mxu0 0.0
    %711 = vmatpush1.msra.mxu0 0.0
    %712 = vmatprep.subr.mxu0 0.0
    %713 = vmatpush1.msra.mxu0 0.0
    %714 = vmatprep.subr.mxu0 0.0
    %715 = vmatpush1.msra.mxu0 0.0
    %716 = vmatprep.subr.mxu0 0.0
    %717 = vmatpush1.msra.mxu0 0.0
    %718 = vmatprep.subr.mxu0 0.0
    %719 = vmatpush1.msra.mxu0 0.0
    %720 = vmatprep.subr.mxu0 0.0
    %721 = vmatpush1.msra.mxu0 0.0
    %722 = vmatprep.subr.mxu0 0.0
    %723 = vmatpush1.msra.mxu0 0.0
    %724 = vmatprep.subr.mxu0 0.0
    %725 = vmatpush1.msra.mxu0 0.0
    %726 = vmatprep.subr.mxu0 0.0
    %727 = vmatpush1.msra.mxu0 0.0
    %728 = vmatprep.subr.mxu0 0.0
    %729 = vmatpush1.msra.mxu0 0.0
    %730 = vmatprep.subr.mxu0 0.0
    %731 = vmatpush1.msra.mxu0 0.0
    %732 = vmatprep.subr.mxu0 0.0
    %733 = vmatpush1.msra.mxu0 0.0
    %734 = vmatprep.subr.mxu0 0.0
    %735 = vmatpush1.msra.mxu0 0.0
    %736 = vmatprep.subr.mxu0 0.0
    %737 = vmatpush1.msra.mxu0 0.0
    %738 = vmatprep.subr.mxu0 0.0
    %739 = vmatpush1.msra.mxu0 0.0
    %740 = vmatprep.subr.mxu0 0.0
    %741 = vmatpush1.msra.mxu0 0.0
    %742 = vmatprep.subr.mxu0 0.0
    %743 = vmatpush1.msra.mxu0 0.0
    %744 = vmatprep.subr.mxu0 0.0
    %745 = vmatpush1.msra.mxu0 0.0
    %746 = vmatprep.mubr.f32.mxu0 0.0
    %747 = vmatmul.mubr.f32.gmra.mrb[0].mxu0 %v676
    %v748 = vpop.f32.mrb[0].mxu0
    %v749 = vadd.f32 %v673, %v748
    %v750 = vpop.f32.mrb[0].mxu0
    %751 = vdwg.mxu0
    %vm752 = vcmp.gt.f32.partialorder %v749, 0.0
    %v753 = vmul.f32 %v749, 0.01
    %v754 = vsel %vm752, %v749, %v753
    %s755 = scalar_lea.vmem [#allocation13], 24
    %v756 = vld [vmem:[%s755] sm:$0xff]
    %v757 = vmul.f32 %v754, %v756
    %s758 = scalar_lea.vmem [#allocation10], 256
    %v759 = vld [vmem:[%s758] sm:$0xff]
    %v760 = vlaneseq
    %v761 = vshrl.u32 %v760, 7
    %v762 = vsub.s32 0, %v761
    %v763 = vrot.slane %v757, %v762
    %v764 = vmul.f32 %v759, %v763
    %s765 = scalar_lea.vmem [#allocation10], 264
    %v766 = vld [vmem:[%s765] sm:$0xff]
    %v767 = vlaneseq
    %v768 = vshrl.u32 %v767, 7
    %v769 = vsub.s32 1, %v768
    %v770 = vrot.slane %v757, %v769
    %v771 = vmul.f32 %v766, %v770
    %s772 = scalar_lea.vmem [#allocation10], 272
    %v773 = vld [vmem:[%s772] sm:$0xff]
    %v774 = vlaneseq
    %v775 = vshrl.u32 %v774, 7
    %v776 = vsub.s32 2, %v775
    %v777 = vrot.slane %v757, %v776
    %v778 = vmul.f32 %v773, %v777
    %s779 = scalar_lea.vmem [#allocation10], 280
    %v780 = vld [vmem:[%s779] sm:$0xff]
    %v781 = vlaneseq
    %v782 = vshrl.u32 %v781, 7
    %v783 = vsub.s32 3, %v782
    %v784 = vrot.slane %v757, %v783
    %v785 = vmul.f32 %v780, %v784
    %v786 = vadd.f32 %v764, %v771
    %v787 = vadd.f32 %v778, %v785
    %v788 = vadd.f32 %v786, %v787
    %s789 = scalar_lea.vmem [#allocation11], 32
    %v790 = vld [vmem:[%s789] sm:$0xff]
    %v791 = vadd.f32 %v788, %v790
    %vm792 = vcmp.gt.f32.partialorder %v791, 0.0
    %v793 = vmul.f32 %v791, 0.01
    %v794 = vsel %vm792, %v791, %v793
    %s795 = scalar_lea.vmem [#allocation13], 32
    %v796 = vld [vmem:[%s795] sm:$0xff]
    %v797 = vmul.f32 %v794, %v796
    %s798 = scalar_lea.vmem [#allocation10], 320
    %v799 = vld [vmem:[%s798] sm:$0xff]
    %v800 = vlaneseq
    %v801 = vshrl.u32 %v800, 7
    %v802 = vsub.s32 0, %v801
    %v803 = vrot.slane %v797, %v802
    %v804 = vmul.f32 %v799, %v803
    %s805 = scalar_lea.vmem [#allocation10], 328
    %v806 = vld [vmem:[%s805] sm:$0xff]
    %v807 = vlaneseq
    %v808 = vshrl.u32 %v807, 7
    %v809 = vsub.s32 1, %v808
    %v810 = vrot.slane %v797, %v809
    %v811 = vmul.f32 %v806, %v810
    %s812 = scalar_lea.vmem [#allocation10], 336
    %v813 = vld [vmem:[%s812] sm:$0xff]
    %v814 = vlaneseq
    %v815 = vshrl.u32 %v814, 7
    %v816 = vsub.s32 2, %v815
    %v817 = vrot.slane %v797, %v816
    %v818 = vmul.f32 %v813, %v817
    %s819 = scalar_lea.vmem [#allocation10], 344
    %v820 = vld [vmem:[%s819] sm:$0xff]
    %v821 = vlaneseq
    %v822 = vshrl.u32 %v821, 7
    %v823 = vsub.s32 3, %v822
    %v824 = vrot.slane %v797, %v823
    %v825 = vmul.f32 %v820, %v824
    %v826 = vadd.f32 %v804, %v811
    %v827 = vadd.f32 %v818, %v825
    %v828 = vadd.f32 %v826, %v827
    %s829 = scalar_lea.vmem [#allocation11], 40
    %v830 = vld [vmem:[%s829] sm:$0xff]
    %v831 = vadd.f32 %v828, %v830
    %vm832 = vcmp.gt.f32.partialorder %v831, 0.0
    %v833 = vmul.f32 %v831, 0.01
    %v834 = vsel %vm832, %v831, %v833
    %s835 = scalar_lea.vmem [#allocation13], 40
    %v836 = vld [vmem:[%s835] sm:$0xff]
    %v837 = vmul.f32 %v834, %v836
    %s838 = scalar_lea.vmem [#allocation10], 384
    %v839 = vld [vmem:[%s838] sm:$0xff]
    %v840 = vlaneseq
    %v841 = vshrl.u32 %v840, 7
    %v842 = vsub.s32 0, %v841
    %v843 = vrot.slane %v837, %v842
    %v844 = vmul.f32 %v839, %v843
    %s845 = scalar_lea.vmem [#allocation10], 392
    %v846 = vld [vmem:[%s845] sm:$0xff]
    %v847 = vlaneseq
    %v848 = vshrl.u32 %v847, 7
    %v849 = vsub.s32 1, %v848
    %v850 = vrot.slane %v837, %v849
    %v851 = vmul.f32 %v846, %v850
    %v852 = vadd.f32 %v844, %v851
    %s853 = scalar_lea.vmem [#allocation11], 48
    %v854 = vld [vmem:[%s853] sm:$0xff]
    %v855 = vadd.f32 %v852, %v854
    %s856 = scalar_lea.vmem [#allocation13], 48
    %v857 = vld [vmem:[%s856] sm:$0xff]
    %v858 = vmul.f32 %v855, %v857
    %v859 = vmul.f32 %v858, 0.01
    %v860 = vtanh.pop %v859
    %v861 = vmul.f32 %v860, 0.4
    %v862 = vadd.f32 %v861, 1.0
    %863 = vst.msk [vmem:[%s10] sm:$0x1] %vm514, %v862
    // Predicated region
    $region70: #{actor_forward.1} parent=1 // pred_check
      _
    $region71: #{actor_forward.1} parent=1 // pred_check_branch
      %865 = sbr.rel (0) target = $region73
    $region72: #{actor_forward.1} parent=1 // pred_region
      _
    $region73: #{actor_forward.1} parent=1 // pred_fallthru
      _
    // Predicated region
    $region74: #{actor_forward.1} parent=1 // pred_check
      _
    $region75: #{actor_forward.1} parent=1 // pred_check_branch
      %867 = sbr.rel (0) target = $region77
    $region76: #{actor_forward.1} parent=1 // pred_region
      _
    $region77: #{actor_forward.1} parent=1 // pred_fallthru
      _
    %868 = vsyncpa [#allocation4], 1
    %869 = vsyncpa [#allocation6], 1
    %870 = vsyncpa [#allocation9], 1
    %871 = vsyncpa [#allocation12], 1

</llo_original>
